<compile_context>
chip_gen: v6e
topology: v6e:2x2x1
jax: 0.10.0
libtpu: 0.0.40
codegen_flags: <defaults>
</compile_context>

<pallas_src>
import jax
import jax.numpy as jnp
from jax.experimental import pallas as pl
from jax.experimental.pallas import tpu as pltpu

CIN = 3
CIN_AUG = CIN + 1          # extra "ones" channel carries the bias through the MXU
COUT = 128
PAD = 1                    # Conv2d(3, 128, 1, stride=1, padding=1)


def _conv1x1_fused_kernel(x_ref, w_ref, o_ref):
    # x_ref: (1, CIN_AUG, tm)   w_ref: (COUT, CIN_AUG)   o_ref: (1, COUT, tm)
    x = x_ref[0]                                                    # (CIN_AUG, tm)
    v1 = jnp.dot(w_ref[...], x,                                      # (COUT, tm) on MXU
                 precision=jax.lax.Precision.HIGHEST,
                 preferred_element_type=jnp.float32)                 # conv + bias (folded)
    # F.relu(v2, 0, 6): torch relu's 2nd positional arg is `inplace` (0 -> False) and a
    # 3rd positional arg is not a clamp-max, so this is a plain relu.
    # TODO(synk): add jnp.minimum(v3, 6.0) here if the module actually intends
    # hardtanh/relu6 (i.e. hardswish) semantics.
    v3 = jnp.maximum(v1 + 3.0, 0.0)                                  # relu(v1 + 3)
    o_ref[0] = (v1 * v3 * (1.0 / 6.0)).astype(o_ref.dtype)           # v1 * v3 / 6


def model_forward(x_nchw, weight, bias, *, tm=8192):
    """x_nchw: (N, 3, H, W) float32. weight: (COUT, CIN). bias: (COUT,)."""
    N, C, H, W = x_nchw.shape
    assert C == CIN
    Hp, Wp = H + 2 * PAD, W + 2 * PAD
    Ms = Hp * Wp                                   # pixels per sample

    # Zero-pad spatially (Conv2d padding=1 with a 1x1 kernel), stay channel-major,
    # then append a ones channel so W_aug @ X_aug includes the bias (also for the
    # all-zero border pixels, whose conv output is exactly the bias).
    x_pad = jnp.pad(x_nchw.astype(jnp.float32),
                    ((0, 0), (0, 0), (PAD, PAD), (PAD, PAD)))
    x_flat = jnp.concatenate(
        [x_pad.reshape(N, CIN, Ms), jnp.ones((N, 1, Ms), jnp.float32)], axis=1)

    w_aug = jnp.concatenate(
        [weight.astype(jnp.float32), bias.reshape(COUT, 1).astype(jnp.float32)],
        axis=1)                                    # (COUT, CIN_AUG)

    # Lane tile: multiple of 128, capped at tm; the ragged last block is clipped
    # by Pallas on writeback — no lane padding, no output slice in the wrapper.
    tm_eff = min(tm, pl.cdiv(Ms, 128) * 128)
    n_blk = pl.cdiv(Ms, tm_eff)

    out_flat = pl.pallas_call(
        _conv1x1_fused_kernel,
        out_shape=jax.ShapeDtypeStruct((N, COUT, Ms), jnp.float32),
        grid_spec=pltpu.PrefetchScalarGridSpec(
            num_scalar_prefetch=0,
            grid=(N, n_blk),
            in_specs=[
                pl.BlockSpec((1, CIN_AUG, tm_eff), lambda n, i: (n, 0, i)),
                pl.BlockSpec((COUT, CIN_AUG), lambda n, i: (0, 0)),
            ],
            out_specs=pl.BlockSpec((1, COUT, tm_eff), lambda n, i: (n, 0, i)),
        ),
        compiler_params=pltpu.CompilerParams(
            dimension_semantics=("parallel", "parallel")),
    )(x_flat, w_aug)

    # Output is already channel-major and exactly (N, COUT, Ms): reshape is free.
    return out_flat.reshape(N, COUT, Hp, Wp)


if __name__ == "__main__":
    key = jax.random.PRNGKey(0)
    kx, kw, kb = jax.random.split(key, 3)

    # Small shapes consistent with the module: batch=2, 3 channels, 16x16 spatial.
    x1 = jax.random.normal(kx, (2, CIN, 16, 16), dtype=jnp.float32)

    # Deterministic parameter init (Conv2d(3, 128, 1) -> weight (128, 3, 1, 1), bias (128,)).
    fan_in = CIN * 1 * 1
    bound = 1.0 / (fan_in ** 0.5)
    weight = jax.random.uniform(kw, (COUT, CIN), jnp.float32, -bound, bound)
    bias = jax.random.uniform(kb, (COUT,), jnp.float32, -bound, bound)

    out = model_forward(x1, weight, bias)
    jax.block_until_ready(out)

    # Pure-JAX reference of the same math.
    xp = jnp.pad(x1, ((0, 0), (0, 0), (PAD, PAD), (PAD, PAD)))
    v1 = jnp.einsum("nchw,oc->nohw", xp, weight,
                    precision=jax.lax.Precision.HIGHEST) + bias[None, :, None, None]
    ref = v1 * jnp.maximum(v1 + 3.0, 0.0) / 6.0

    assert out.shape == (2, COUT, 18, 18)
    assert jnp.allclose(out, ref, atol=1e-4, rtol=1e-4)

    print("KERNEL_OK")
</pallas_src>

<mosaic_0001>
module attributes {stable_mosaic.version = 11 : i64} {
  func.func @_conv1x1_fused_kernel(%arg0: i32, %arg1: i32, %arg2: memref<1x4x384xf32, #tpu.memory_space<vmem>>, %arg3: memref<128x4xf32, #tpu.memory_space<vmem>>, %arg4: memref<1x128x384xf32, #tpu.memory_space<vmem>>) attributes {dimension_semantics = [#tpu.dimension_semantics<parallel>, #tpu.dimension_semantics<parallel>], iteration_bounds = array<i64: 2, 1>, scalar_prefetch = 0 : i64, scratch_operands = 0 : i64, tpu.core_type = #tpu.core_type<tc>, window_params = [{transform_indices = @transform_0, window_bounds = array<i64: 1, 4, 384>}, {pipeline_mode = #tpu.pipeline_mode<synchronous>, transform_indices = @transform_1, window_bounds = array<i64: 128, 4>}, {transform_indices = @transform_2, window_bounds = array<i64: 1, 128, 384>}]} {
    %c0 = arith.constant 0 : index
    %c0_0 = arith.constant 0 : index
    %c0_1 = arith.constant 0 : index
    %0 = vector.load %arg2[%c0, %c0_0, %c0_1] : memref<1x4x384xf32, #tpu.memory_space<vmem>>, vector<1x4x384xf32>
    %1 = vector.shape_cast %0 : vector<1x4x384xf32> to vector<4x384xf32>
    %c0_2 = arith.constant 0 : index
    %c0_3 = arith.constant 0 : index
    %2 = vector.load %arg3[%c0_2, %c0_3] : memref<128x4xf32, #tpu.memory_space<vmem>>, vector<128x4xf32>
    %cst = arith.constant dense<0.000000e+00> : vector<128x384xf32>
    %3 = tpu.matmul %2, %1, %cst {dimension_numbers = #tpu.dot_dimension_numbers<[1], [0], [0], [1], [0, 0, 1, 1], [], []>, precision = #tpu.contract_precision<fp32>} : vector<128x4xf32>, vector<4x384xf32>, vector<128x384xf32> -> vector<128x384xf32>
    %cst_4 = arith.constant 3.000000e+00 : f32
    %4 = vector.broadcast %cst_4 : f32 to vector<128x384xf32>
    %5 = arith.addf %3, %4 : vector<128x384xf32>
    %cst_5 = arith.constant 0.000000e+00 : f32
    %6 = vector.broadcast %cst_5 : f32 to vector<128x384xf32>
    %7 = arith.maximumf %5, %6 : vector<128x384xf32>
    %8 = arith.mulf %3, %7 : vector<128x384xf32>
    %cst_6 = arith.constant 0.166666672 : f32
    %9 = vector.broadcast %cst_6 : f32 to vector<128x384xf32>
    %10 = arith.mulf %8, %9 : vector<128x384xf32>
    %c0_7 = arith.constant 0 : index
    %c0_8 = arith.constant 0 : index
    %c0_9 = arith.constant 0 : index
    %11 = vector.load %arg4[%c0_7, %c0_8, %c0_9] : memref<1x128x384xf32, #tpu.memory_space<vmem>>, vector<1x128x384xf32>
    %12 = vector.shape_cast %11 : vector<1x128x384xf32> to vector<128x384xf32>
    %13 = vector.shape_cast %10 : vector<128x384xf32> to vector<1x128x384xf32>
    tpu.vector_store %arg4[%c0_7, %c0_8, %c0_9], %13 {strides = array<i32>} : memref<1x128x384xf32, #tpu.memory_space<vmem>>, vector<1x128x384xf32>,
    return
  }
  func.func @transform_0(%arg0: i32, %arg1: i32) -> (i32, i32, i32) {
    %c0_i32 = arith.constant 0 : i32
    %c0_i32_0 = arith.constant 0 : i32
    return %arg0, %c0_i32, %arg1 : i32, i32, i32
  }
  func.func @transform_1(%arg0: i32, %arg1: i32) -> (i32, i32) {
    %c0_i32 = arith.constant 0 : i32
    %c0_i32_0 = arith.constant 0 : i32
    %c0_i32_1 = arith.constant 0 : i32
    return %c0_i32, %c0_i32_0 : i32, i32
  }
  func.func @transform_2(%arg0: i32, %arg1: i32) -> (i32, i32, i32) {
    %c0_i32 = arith.constant 0 : i32
    %c0_i32_0 = arith.constant 0 : i32
    return %arg0, %c0_i32, %arg1 : i32, i32, i32
  }
}

</mosaic_0001>

<llo_original>
// kernel: tpu_custom_call.1
$region0: #{tpu_custom_call.1}
  #allocation0 [shape = 'u32[]', space=smem, size = 0x4, offset = 0x4, fixed_abs, tag = 'smem constant byte address 0x4 - core index']
  #allocation1 [shape = 'u32[144,128]{1,0:T(1,128)}', space=vmem, size = 0x12000, scoped, tag = 'internal scratch']
  %s0 = inlined_call_operand.vmem [shape: f32[2,4,324], index: 0, kind: input, shape index: {}]
  %s1 = inlined_call_operand.vmem [shape: f32[128,4], index: 1, kind: input, shape index: {}]
  %s2 = inlined_call_operand.vmem [shape: f32[2,128,324], index: 2, kind: output, shape index: {}]
  %s3 = sld [smem:[#allocation0]]
  $region41: #{tpu_custom_call.1} parent=0
    _
  %s5 = ssub.s32 1, %s3
  %s6 = scalar_select 0, %s5, %s3
  loop: start=0, step=1, limit=4
  $region2: #{tpu_custom_call.1} parent=0 // loop_pre_header
    _
  $region3: #{tpu_custom_call.1} parent=0 // loop_header
    %s8 = sphi 0, %s12
    %p9 = scmp.ge.s32.totalorder %s8, 4
    %s15 = sphi 0, %s27
    %s16 = sphi 0, %s23
    %s17 = sphi 0, %s15
    %s18 = sphi 0, %s16
    %s19 = sphi 0, %s17
    %s20 = sphi 0, %s18
    %s32 = sphi 0, %s34
    %s35 = sphi 0, %s32
    %s36 = sphi 0, %s35
    %s52 = sphi 0, %s36
    %s56 = sphi 0, %s56
    %s58 = sphi 0, %s56
    %s59 = sphi 0, %s58
    %s73 = sphi 0, %s59
    %s81 = sphi 0, %s83
    %s84 = sphi 0, %s81
    %s85 = sphi 0, %s84
    %s101 = sphi 0, %s85
  $region4: #{tpu_custom_call.1} parent=0 // loop_header_branch
    %11 = sbr.rel (%p9) target = $region8
  $region5: #{tpu_custom_call.1} parent=0 // loop_body
    %s13 = ssub.s32 %s8, 1
    %s14 = ssub.s32 %s8, 2
    %s21 = sadd.s32 1, %s16
    %p22 = scmp.ge.s32.totalorder %s21, 1
    %s23 = scalar_select %p22, 0, %s21
    %s24 = sadd.s32 1, %s15
    %s25 = scalar_select %p22, %s24, %s15
    %p26 = scmp.ge.s32.totalorder %s25, 2
    %s27 = scalar_select %p26, 0, %s25
    %s28 = ssub.s32 %s15, %s27
    %s29 = ssub.s32 %s16, %s23
    %s30 = sor.u32 %s28, %s29
    %p31 = scmp.eq.s32.totalorder %s30, 0
    %s33 = sadd.s32 %s32, 1
    %s34 = scalar_select %p31, %s32, %s33
    %p37 = pneg %p31
    %p38 = scmp.eq.s32.totalorder %s8, 1
    %p39 = por %p37, %p38
    %p40 = scmp.ne.s32.totalorder %s32, %s35
    %p41 = scmp.eq.s32.totalorder %s8, 0
    %p42 = por %p40, %p41
    %p43 = scmp.ne.s32.totalorder %s32, %s35
    %p44 = scmp.eq.s32.totalorder %s13, 1
    %p45 = por %p43, %p44
    %p46 = scmp.ne.s32.totalorder %s35, %s36
    %p47 = scmp.eq.s32.totalorder %s13, 0
    %p48 = por %p46, %p47
    %p49 = scmp.ne.s32.totalorder %s35, %s36
    %p50 = scmp.eq.s32.totalorder %s14, 1
    %p51 = por %p49, %p50
    %p53 = scmp.ne.s32.totalorder %s36, %s52
    %p54 = scmp.eq.s32.totalorder %s14, 0
    %p55 = por %p53, %p54
    %s57 = sadd.s32 %s56, 1
    %p60 = scmp.eq.s32.totalorder %s8, 1
    %p61 = scmp.ne.s32.totalorder %s56, %s58
    %p62 = scmp.eq.s32.totalorder %s8, 0
    %p63 = por %p61, %p62
    %p64 = scmp.ne.s32.totalorder %s56, %s58
    %p65 = scmp.eq.s32.totalorder %s13, 1
    %p66 = por %p64, %p65
    %p67 = scmp.ne.s32.totalorder %s58, %s59
    %p68 = scmp.eq.s32.totalorder %s13, 0
    %p69 = por %p67, %p68
    %p70 = scmp.ne.s32.totalorder %s58, %s59
    %p71 = scmp.eq.s32.totalorder %s14, 1
    %p72 = por %p70, %p71
    %p74 = scmp.ne.s32.totalorder %s59, %s73
    %p75 = scmp.eq.s32.totalorder %s14, 0
    %p76 = por %p74, %p75
    %s77 = ssub.s32 %s15, %s27
    %s78 = ssub.s32 %s16, %s23
    %s79 = sor.u32 %s77, %s78
    %p80 = scmp.eq.s32.totalorder %s79, 0
    %s82 = sadd.s32 %s81, 1
    %s83 = scalar_select %p80, %s81, %s82
    %p86 = pneg %p80
    %p87 = scmp.eq.s32.totalorder %s8, 1
    %p88 = por %p86, %p87
    %p89 = scmp.ne.s32.totalorder %s81, %s84
    %p90 = scmp.eq.s32.totalorder %s8, 0
    %p91 = por %p89, %p90
    %p92 = scmp.ne.s32.totalorder %s81, %s84
    %p93 = scmp.eq.s32.totalorder %s13, 1
    %p94 = por %p92, %p93
    %p95 = scmp.ne.s32.totalorder %s84, %s85
    %p96 = scmp.eq.s32.totalorder %s13, 0
    %p97 = por %p95, %p96
    %p98 = scmp.ne.s32.totalorder %s84, %s85
    %p99 = scmp.eq.s32.totalorder %s14, 1
    %p100 = por %p98, %p99
    %p102 = scmp.ne.s32.totalorder %s85, %s101
    %p103 = scmp.eq.s32.totalorder %s14, 0
    %p104 = por %p102, %p103
    %p105 = scmp.le.s32.totalorder 1, %s8
    %p106 = scmp.lt.s32.totalorder %s8, 3
    %p107 = pnand %p105, %p106
    %p108 = pneg %p107
    // Predicated region
    $region9: #{tpu_custom_call.1} parent=5 // pred_check
      _
    $region10: #{tpu_custom_call.1} parent=5 // pred_check_branch
      %110 = sbr.rel (%p107) target = $region12
    $region11: #{tpu_custom_call.1} parent=5 // pred_region
      %s111 = ssub.s32 %s8, 1
      // Predicated region
      $region13: #{tpu_custom_call.1} parent=11 // pred_check
        %p112 = pneg %p69
      $region14: #{tpu_custom_call.1} parent=11 // pred_check_branch
        %114 = sbr.rel (%p112) target = $region16
      $region15: #{tpu_custom_call.1} parent=11 // pred_region
        _
      $region16: #{tpu_custom_call.1} parent=11 // pred_fallthru
        _
    $region12: #{tpu_custom_call.1} parent=5 // pred_fallthru
      _
    %p115 = scmp.lt.s32.totalorder %s8, 2
    // Predicated region
    $region17: #{tpu_custom_call.1} parent=5 // pred_check
      %p116 = pneg %p115
    $region18: #{tpu_custom_call.1} parent=5 // pred_check_branch
      %118 = sbr.rel (%p116) target = $region20
    $region19: #{tpu_custom_call.1} parent=5 // pred_region
      // Predicated region
      $region21: #{tpu_custom_call.1} parent=19 // pred_check
        %p119 = pneg %p42
      $region22: #{tpu_custom_call.1} parent=19 // pred_check_branch
        %121 = sbr.rel (%p119) target = $region24
      $region23: #{tpu_custom_call.1} parent=19 // pred_region
        %s122 = smul.u32 3, %s16
        %p123 = scmp.lt.s32.totalorder %s15, 1
        %s124 = scalar_select %p123, %s15, 1
        %p125 = scmp.lt.s32.totalorder %s122, 2
        %s126 = scalar_select %p125, %s122, 2
        %s127 = smul.addr %s124, 3
        %s128 = sadd.s32 %s126, %s127
        %s129 = smul.addr %s128, 4
        %s130 = scalar_lea.vmem %s0, %s129
        %s131 = smul.u32 3, %s16
      $region24: #{tpu_custom_call.1} parent=19 // pred_fallthru
        _
    $region20: #{tpu_custom_call.1} parent=5 // pred_fallthru
      _
    %p132 = scmp.le.s32.totalorder 1, %s8
    %p133 = scmp.lt.s32.totalorder %s8, 3
    %p134 = pnand %p132, %p133
    %p135 = pneg %p134
    // Predicated region
    $region25: #{tpu_custom_call.1} parent=5 // pred_check
      _
    $region26: #{tpu_custom_call.1} parent=5 // pred_check_branch
      %137 = sbr.rel (%p134) target = $region28
    $region27: #{tpu_custom_call.1} parent=5 // pred_region
      %s138 = ssub.s32 %s8, 1
      %s139 = smul.u32 3, %s18
      %p140 = scmp.lt.s32.totalorder %s17, 1
      %s141 = scalar_select %p140, %s17, 1
      %p142 = scmp.lt.s32.totalorder %s139, 2
      %s143 = scalar_select %p142, %s139, 2
      %s144 = smul.addr %s141, 3
      %s145 = sadd.s32 %s143, %s144
      %s146 = smul.addr %s145, 4
      %s147 = scalar_lea.vmem %s0, %s146
      %p148 = pneg %p48
      %p149 = pneg %p45
      %p150 = pneg %p69
      %p151 = pneg %p66
      %p152 = pneg %p97
      %p153 = pneg %p94
      %s154 = smul.u32 3, %s18
      %p155 = scmp.lt.s32.totalorder %s17, 1
      %s156 = scalar_select %p155, %s17, 1
      %p157 = scmp.lt.s32.totalorder %s154, 2
      %s158 = scalar_select %p157, %s154, 2
      %s159 = smul.addr %s156, 48
      %s160 = sadd.s32 %s158, %s159
      %s161 = smul.addr %s160, 8
      %s162 = scalar_lea.vmem %s2, %s161
      %s163 = smul.u32 3, %s18
      %p164 = scmp.lt.s32.totalorder %s17, 1
      %s165 = scalar_select %p164, %s17, 1
      %p166 = scmp.lt.s32.totalorder %s163, 2
      %s167 = scalar_select %p166, %s163, 2
      %s168 = smul.addr %s165, 3
      %s169 = sadd.s32 %s167, %s168
      %s170 = smul.addr %s169, 4
      %s171 = scalar_lea.vmem %s0, %s170
      %s172 = smul.u32 3, %s18
      %s173 = smul.u32 3, %s18
      %p174 = scmp.lt.s32.totalorder %s17, 1
      %s175 = scalar_select %p174, %s17, 1
      %p176 = scmp.lt.s32.totalorder %s173, 2
      %s177 = scalar_select %p176, %s173, 2
      %s178 = smul.addr %s175, 48
      %s179 = sadd.s32 %s177, %s178
      %s180 = smul.addr %s179, 8
      %s181 = scalar_lea.vmem %s2, %s180
      %s182 = smul.u32 3, %s18
      %v183 = vld [vmem:[%s171] sm:$0xff]
      %v184 = vld [vmem:[%s171 + $0x8] sm:$0xf]
      %v185 = vld [vmem:[%s1] sm:$0xff]
      %v186 = vld [vmem:[%s1 + $0x8] sm:$0xff]
      %v187 = vld [vmem:[%s1 + $0x10] sm:$0xff]
      %v188 = vld [vmem:[%s1 + $0x18] sm:$0xff]
      %v189 = vld [vmem:[%s1 + $0x20] sm:$0xff]
      %v190 = vld [vmem:[%s1 + $0x28] sm:$0xff]
      %v191 = vld [vmem:[%s1 + $0x30] sm:$0xff]
      %v192 = vld [vmem:[%s1 + $0x38] sm:$0xff]
      %v193 = vld [vmem:[%s1 + $0x40] sm:$0xff]
      %v194 = vld [vmem:[%s1 + $0x48] sm:$0xff]
      %v195 = vld [vmem:[%s1 + $0x50] sm:$0xff]
      %v196 = vld [vmem:[%s1 + $0x58] sm:$0xff]
      %v197 = vld [vmem:[%s1 + $0x60] sm:$0xff]
      %v198 = vld [vmem:[%s1 + $0x68] sm:$0xff]
      %v199 = vld [vmem:[%s1 + $0x70] sm:$0xff]
      %v200 = vld [vmem:[%s1 + $0x78] sm:$0xff]
      %v203 = vcombine.high %v183, %v183
      %vm204 = vcmask 31744
      %v206 = vsel %vm204, %v185, 0
      %v209 = vsel %vm204, %v186, 0
      %v212 = vsel %vm204, %v187, 0
      %v215 = vsel %vm204, %v188, 0
      %v218 = vsel %vm204, %v189, 0
      %v221 = vsel %vm204, %v190, 0
      %v224 = vsel %vm204, %v191, 0
      %v227 = vsel %vm204, %v192, 0
      %v230 = vsel %vm204, %v193, 0
      %v233 = vsel %vm204, %v194, 0
      %v236 = vsel %vm204, %v195, 0
      %v239 = vsel %vm204, %v196, 0
      %v242 = vsel %vm204, %v197, 0
      %v245 = vsel %vm204, %v198, 0
      %v248 = vsel %vm204, %v199, 0
      %v251 = vsel %vm204, %v200, 0
      %vm253 = vcmask 1043456
      %v254 = vsel %vm253, %v183, 0
      %v256 = vsel %vm253, %v203, 0
      %v258 = vsel %vm253, %v184, 0
      %260 = vmatprep.subr.mxu0 0.0
      %261 = vmatpush1.msra.mxu0 0.0
      %262 = vmatprep.subr.mxu0 0.0
      %263 = vmatpush1.msra.mxu0 0.0
      %264 = vmatprep.subr.mxu0 0.0
      %265 = vmatpush1.msra.mxu0 0.0
      %266 = vmatprep.subr.mxu0 0.0
      %267 = vmatpush1.msra.mxu0 0.0
      %268 = vmatprep.subr.mxu0 0.0
      %269 = vmatpush1.msra.mxu0 0.0
      %270 = vmatprep.subr.mxu0 0.0
      %271 = vmatpush1.msra.mxu0 0.0
      %272 = vmatprep.subr.mxu0 0.0
      %273 = vmatpush1.msra.mxu0 0.0
      %274 = vmatprep.subr.mxu0 0.0
      %275 = vmatpush1.msra.mxu0 0.0
      %276 = vmatprep.subr.mxu0 0.0
      %277 = vmatpush1.msra.mxu0 0.0
      %278 = vmatprep.subr.mxu0 0.0
      %279 = vmatpush1.msra.mxu0 0.0
      %280 = vmatprep.subr.mxu0 0.0
      %281 = vmatpush1.msra.mxu0 0.0
      %282 = vmatprep.subr.mxu0 0.0
      %283 = vmatpush1.msra.mxu0 0.0
      %284 = vmatprep.subr.mxu0 0.0
      %285 = vmatpush1.msra.mxu0 0.0
      %286 = vmatprep.subr.mxu0 0.0
      %287 = vmatpush1.msra.mxu0 0.0
      %288 = vmatprep.subr.mxu0 0.0
      %289 = vmatpush1.msra.mxu0 0.0
      %v290 = vand.u32 %v256, 4294901760
      %291 = vmatprep.subr.mxu0 %v290
      %v292 = vand.u32 %v254, 4294901760
      %293 = vmatpush1.msra.mxu0 %v292
      %294 = vmatprep.subr.mxu0 0.0
      %295 = vmatpush2.msra.mxu0 0.0
      %296 = vmatprep.subr.mxu0 0.0
      %297 = vmatpush2.msra.mxu0 0.0
      %298 = vmatprep.subr.mxu0 0.0
      %299 = vmatpush2.msra.mxu0 0.0
      %300 = vmatprep.subr.mxu0 0.0
      %301 = vmatpush2.msra.mxu0 0.0
      %302 = vmatprep.subr.mxu0 0.0
      %303 = vmatpush2.msra.mxu0 0.0
      %304 = vmatprep.subr.mxu0 0.0
      %305 = vmatpush2.msra.mxu0 0.0
      %306 = vmatprep.subr.mxu0 0.0
      %307 = vmatpush2.msra.mxu0 0.0
      %308 = vmatprep.subr.mxu0 0.0
      %309 = vmatpush2.msra.mxu0 0.0
      %310 = vmatprep.subr.mxu0 0.0
      %311 = vmatpush2.msra.mxu0 0.0
      %312 = vmatprep.subr.mxu0 0.0
      %313 = vmatpush2.msra.mxu0 0.0
      %314 = vmatprep.subr.mxu0 0.0
      %315 = vmatpush2.msra.mxu0 0.0
      %316 = vmatprep.subr.mxu0 0.0
      %317 = vmatpush2.msra.mxu0 0.0
      %318 = vmatprep.subr.mxu0 0.0
      %319 = vmatpush2.msra.mxu0 0.0
      %320 = vmatprep.subr.mxu0 0.0
      %321 = vmatpush2.msra.mxu0 0.0
      %322 = vmatprep.subr.mxu0 0.0
      %323 = vmatpush2.msra.mxu0 0.0
      %324 = vmatprep.subr.mxu0 0.0
      %325 = vmatpush2.msra.mxu0 0.0
      %326 = vmatprep.mubr.f32.mxu0 0.0
      %v327 = vand.u32 %v206, 4294901760
      %v328 = vsub.f32 %v206, %v327
      %v329 = vand.u32 %v328, 4294901760
      %v330 = vsub.f32 %v328, %v329
      %v331 = vand.u32 %v330, 4294901760
      %332 = vmatmul.mubr.f32.gmra.mxu0 %v331
      %v333 = vpop.f32.mrf.mxu0
      %v334 = vadd.f32 0.0, %v333
      %v335 = vpop.f32.mrf.mxu0
      %v336 = vadd.f32 0.0, %v335
      %337 = vmatprep.mubr.f32.mxu0 0.0
      %v338 = vand.u32 %v209, 4294901760
      %v339 = vsub.f32 %v209, %v338
      %v340 = vand.u32 %v339, 4294901760
      %v341 = vsub.f32 %v339, %v340
      %v342 = vand.u32 %v341, 4294901760
      %343 = vmatmul.mubr.f32.gmra.mxu0 %v342
      %v344 = vpop.f32.mrf.mxu0
      %v345 = vadd.f32 0.0, %v344
      %v346 = vpop.f32.mrf.mxu0
      %v347 = vadd.f32 0.0, %v346
      %348 = vmatprep.mubr.f32.mxu0 0.0
      %v349 = vand.u32 %v212, 4294901760
      %v350 = vsub.f32 %v212, %v349
      %v351 = vand.u32 %v350, 4294901760
      %v352 = vsub.f32 %v350, %v351
      %v353 = vand.u32 %v352, 4294901760
      %354 = vmatmul.mubr.f32.gmra.mxu0 %v353
      %v355 = vpop.f32.mrf.mxu0
      %v356 = vadd.f32 0.0, %v355
      %v357 = vpop.f32.mrf.mxu0
      %v358 = vadd.f32 0.0, %v357
      %359 = vmatprep.mubr.f32.mxu0 0.0
      %v360 = vand.u32 %v215, 4294901760
      %v361 = vsub.f32 %v215, %v360
      %v362 = vand.u32 %v361, 4294901760
      %v363 = vsub.f32 %v361, %v362
      %v364 = vand.u32 %v363, 4294901760
      %365 = vmatmul.mubr.f32.gmra.mxu0 %v364
      %v366 = vpop.f32.mrf.mxu0
      %v367 = vadd.f32 0.0, %v366
      %v368 = vpop.f32.mrf.mxu0
      %v369 = vadd.f32 0.0, %v368
      %370 = vmatprep.mubr.f32.mxu0 0.0
      %v371 = vand.u32 %v218, 4294901760
      %v372 = vsub.f32 %v218, %v371
      %v373 = vand.u32 %v372, 4294901760
      %v374 = vsub.f32 %v372, %v373
      %v375 = vand.u32 %v374, 4294901760
      %376 = vmatmul.mubr.f32.gmra.mxu0 %v375
      %v377 = vpop.f32.mrf.mxu0
      %v378 = vadd.f32 0.0, %v377
      %v379 = vpop.f32.mrf.mxu0
      %v380 = vadd.f32 0.0, %v379
      %381 = vmatprep.mubr.f32.mxu0 0.0
      %v382 = vand.u32 %v221, 4294901760
      %v383 = vsub.f32 %v221, %v382
      %v384 = vand.u32 %v383, 4294901760
      %v385 = vsub.f32 %v383, %v384
      %v386 = vand.u32 %v385, 4294901760
      %387 = vmatmul.mubr.f32.gmra.mxu0 %v386
      %v388 = vpop.f32.mrf.mxu0
      %v389 = vadd.f32 0.0, %v388
      %v390 = vpop.f32.mrf.mxu0
      %v391 = vadd.f32 0.0, %v390
      %392 = vmatprep.mubr.f32.mxu0 0.0
      %v393 = vand.u32 %v224, 4294901760
      %v394 = vsub.f32 %v224, %v393
      %v395 = vand.u32 %v394, 4294901760
      %v396 = vsub.f32 %v394, %v395
      %v397 = vand.u32 %v396, 4294901760
      %398 = vmatmul.mubr.f32.gmra.mxu0 %v397
      %v399 = vpop.f32.mrf.mxu0
      %v400 = vadd.f32 0.0, %v399
      %v401 = vpop.f32.mrf.mxu0
      %v402 = vadd.f32 0.0, %v401
      %403 = vmatprep.mubr.f32.mxu0 0.0
      %v404 = vand.u32 %v227, 4294901760
      %v405 = vsub.f32 %v227, %v404
      %v406 = vand.u32 %v405, 4294901760
      %v407 = vsub.f32 %v405, %v406
      %v408 = vand.u32 %v407, 4294901760
      %409 = vmatmul.mubr.f32.gmra.mxu0 %v408
      %v410 = vpop.f32.mrf.mxu0
      %v411 = vadd.f32 0.0, %v410
      %v412 = vpop.f32.mrf.mxu0
      %v413 = vadd.f32 0.0, %v412
      %414 = vmatprep.mubr.f32.mxu0 0.0
      %v415 = vand.u32 %v230, 4294901760
      %v416 = vsub.f32 %v230, %v415
      %v417 = vand.u32 %v416, 4294901760
      %v418 = vsub.f32 %v416, %v417
      %v419 = vand.u32 %v418, 4294901760
      %420 = vmatmul.mubr.f32.gmra.mxu0 %v419
      %v421 = vpop.f32.mrf.mxu0
      %v422 = vadd.f32 0.0, %v421
      %v423 = vpop.f32.mrf.mxu0
      %v424 = vadd.f32 0.0, %v423
      %425 = vmatprep.mubr.f32.mxu0 0.0
      %v426 = vand.u32 %v233, 4294901760
      %v427 = vsub.f32 %v233, %v426
      %v428 = vand.u32 %v427, 4294901760
      %v429 = vsub.f32 %v427, %v428
      %v430 = vand.u32 %v429, 4294901760
      %431 = vmatmul.mubr.f32.gmra.mxu0 %v430
      %v432 = vpop.f32.mrf.mxu0
      %v433 = vadd.f32 0.0, %v432
      %v434 = vpop.f32.mrf.mxu0
      %v435 = vadd.f32 0.0, %v434
      %436 = vmatprep.mubr.f32.mxu0 0.0
      %v437 = vand.u32 %v236, 4294901760
      %v438 = vsub.f32 %v236, %v437
      %v439 = vand.u32 %v438, 4294901760
      %v440 = vsub.f32 %v438, %v439
      %v441 = vand.u32 %v440, 4294901760
      %442 = vmatmul.mubr.f32.gmra.mxu0 %v441
      %v443 = vpop.f32.mrf.mxu0
      %v444 = vadd.f32 0.0, %v443
      %v445 = vpop.f32.mrf.mxu0
      %v446 = vadd.f32 0.0, %v445
      %447 = vmatprep.mubr.f32.mxu0 0.0
      %v448 = vand.u32 %v239, 4294901760
      %v449 = vsub.f32 %v239, %v448
      %v450 = vand.u32 %v449, 4294901760
      %v451 = vsub.f32 %v449, %v450
      %v452 = vand.u32 %v451, 4294901760
      %453 = vmatmul.mubr.f32.gmra.mxu0 %v452
      %v454 = vpop.f32.mrf.mxu0
      %v455 = vadd.f32 0.0, %v454
      %v456 = vpop.f32.mrf.mxu0
      %v457 = vadd.f32 0.0, %v456
      %458 = vmatprep.mubr.f32.mxu0 0.0
      %v459 = vand.u32 %v242, 4294901760
      %v460 = vsub.f32 %v242, %v459
      %v461 = vand.u32 %v460, 4294901760
      %v462 = vsub.f32 %v460, %v461
      %v463 = vand.u32 %v462, 4294901760
      %464 = vmatmul.mubr.f32.gmra.mxu0 %v463
      %v465 = vpop.f32.mrf.mxu0
      %v466 = vadd.f32 0.0, %v465
      %v467 = vpop.f32.mrf.mxu0
      %v468 = vadd.f32 0.0, %v467
      %469 = vmatprep.mubr.f32.mxu0 0.0
      %v470 = vand.u32 %v245, 4294901760
      %v471 = vsub.f32 %v245, %v470
      %v472 = vand.u32 %v471, 4294901760
      %v473 = vsub.f32 %v471, %v472
      %v474 = vand.u32 %v473, 4294901760
      %475 = vmatmul.mubr.f32.gmra.mxu0 %v474
      %v476 = vpop.f32.mrf.mxu0
      %v477 = vadd.f32 0.0, %v476
      %v478 = vpop.f32.mrf.mxu0
      %v479 = vadd.f32 0.0, %v478
      %480 = vmatprep.mubr.f32.mxu0 0.0
      %v481 = vand.u32 %v248, 4294901760
      %v482 = vsub.f32 %v248, %v481
      %v483 = vand.u32 %v482, 4294901760
      %v484 = vsub.f32 %v482, %v483
      %v485 = vand.u32 %v484, 4294901760
      %486 = vmatmul.mubr.f32.gmra.mxu0 %v485
      %v487 = vpop.f32.mrf.mxu0
      %v488 = vadd.f32 0.0, %v487
      %v489 = vpop.f32.mrf.mxu0
      %v490 = vadd.f32 0.0, %v489
      %491 = vmatprep.mubr.f32.mxu0 0.0
      %v492 = vand.u32 %v251, 4294901760
      %v493 = vsub.f32 %v251, %v492
      %v494 = vand.u32 %v493, 4294901760
      %v495 = vsub.f32 %v493, %v494
      %v496 = vand.u32 %v495, 4294901760
      %497 = vmatmul.mubr.f32.gmra.mxu0 %v496
      %v498 = vpop.f32.mrf.mxu0
      %v499 = vadd.f32 0.0, %v498
      %v500 = vpop.f32.mrf.mxu0
      %v501 = vadd.f32 0.0, %v500
      %502 = vdwg.mxu0
      %503 = vmatprep.subr.mxu0 0.0
      %504 = vmatpush1.msra.mxu0 0.0
      %505 = vmatprep.subr.mxu0 0.0
      %506 = vmatpush1.msra.mxu0 0.0
      %507 = vmatprep.subr.mxu0 0.0
      %508 = vmatpush1.msra.mxu0 0.0
      %509 = vmatprep.subr.mxu0 0.0
      %510 = vmatpush1.msra.mxu0 0.0
      %511 = vmatprep.subr.mxu0 0.0
      %512 = vmatpush1.msra.mxu0 0.0
      %513 = vmatprep.subr.mxu0 0.0
      %514 = vmatpush1.msra.mxu0 0.0
      %515 = vmatprep.subr.mxu0 0.0
      %516 = vmatpush1.msra.mxu0 0.0
      %517 = vmatprep.subr.mxu0 0.0
      %518 = vmatpush1.msra.mxu0 0.0
      %519 = vmatprep.subr.mxu0 0.0
      %520 = vmatpush1.msra.mxu0 0.0
      %521 = vmatprep.subr.mxu0 0.0
      %522 = vmatpush1.msra.mxu0 0.0
      %523 = vmatprep.subr.mxu0 0.0
      %524 = vmatpush1.msra.mxu0 0.0
      %525 = vmatprep.subr.mxu0 0.0
      %526 = vmatpush1.msra.mxu0 0.0
      %527 = vmatprep.subr.mxu0 0.0
      %528 = vmatpush1.msra.mxu0 0.0
      %529 = vmatprep.subr.mxu0 0.0
      %530 = vmatpush1.msra.mxu0 0.0
      %531 = vmatprep.subr.mxu0 0.0
      %532 = vmatpush1.msra.mxu0 0.0
      %v533 = vand.u32 %v256, 4294901760
      %v534 = vsub.f32 %v256, %v533
      %v535 = vand.u32 %v534, 4294901760
      %v536 = vsub.f32 %v534, %v535
      %v537 = vand.u32 %v536, 4294901760
      %538 = vmatprep.subr.mxu0 %v537
      %v539 = vand.u32 %v254, 4294901760
      %v540 = vsub.f32 %v254, %v539
      %v541 = vand.u32 %v540, 4294901760
      %v542 = vsub.f32 %v540, %v541
      %v543 = vand.u32 %v542, 4294901760
      %544 = vmatpush1.msra.mxu0 %v543
      %545 = vmatprep.subr.mxu0 0.0
      %546 = vmatpush2.msra.mxu0 0.0
      %547 = vmatprep.subr.mxu0 0.0
      %548 = vmatpush2.msra.mxu0 0.0
      %549 = vmatprep.subr.mxu0 0.0
      %550 = vmatpush2.msra.mxu0 0.0
      %551 = vmatprep.subr.mxu0 0.0
      %552 = vmatpush2.msra.mxu0 0.0
      %553 = vmatprep.subr.mxu0 0.0
      %554 = vmatpush2.msra.mxu0 0.0
      %555 = vmatprep.subr.mxu0 0.0
      %556 = vmatpush2.msra.mxu0 0.0
      %557 = vmatprep.subr.mxu0 0.0
      %558 = vmatpush2.msra.mxu0 0.0
      %559 = vmatprep.subr.mxu0 0.0
      %560 = vmatpush2.msra.mxu0 0.0
      %561 = vmatprep.subr.mxu0 0.0
      %562 = vmatpush2.msra.mxu0 0.0
      %563 = vmatprep.subr.mxu0 0.0
      %564 = vmatpush2.msra.mxu0 0.0
      %565 = vmatprep.subr.mxu0 0.0
      %566 = vmatpush2.msra.mxu0 0.0
      %567 = vmatprep.subr.mxu0 0.0
      %568 = vmatpush2.msra.mxu0 0.0
      %569 = vmatprep.subr.mxu0 0.0
      %570 = vmatpush2.msra.mxu0 0.0
      %571 = vmatprep.subr.mxu0 0.0
      %572 = vmatpush2.msra.mxu0 0.0
      %573 = vmatprep.subr.mxu0 0.0
      %574 = vmatpush2.msra.mxu0 0.0
      %575 = vmatprep.subr.mxu0 0.0
      %576 = vmatpush2.msra.mxu0 0.0
      %577 = vmatprep.mubr.f32.mxu0 0.0
      %v578 = vand.u32 %v206, 4294901760
      %579 = vmatmul.mubr.f32.gmra.mxu0 %v578
      %v580 = vpop.f32.mrf.mxu0
      %v581 = vadd.f32 %v334, %v580
      %v582 = vpop.f32.mrf.mxu0
      %v583 = vadd.f32 %v336, %v582
      %584 = vmatprep.mubr.f32.mxu0 0.0
      %v585 = vand.u32 %v209, 4294901760
      %586 = vmatmul.mubr.f32.gmra.mxu0 %v585
      %v587 = vpop.f32.mrf.mxu0
      %v588 = vadd.f32 %v345, %v587
      %v589 = vpop.f32.mrf.mxu0
      %v590 = vadd.f32 %v347, %v589
      %591 = vmatprep.mubr.f32.mxu0 0.0
      %v592 = vand.u32 %v212, 4294901760
      %593 = vmatmul.mubr.f32.gmra.mxu0 %v592
      %v594 = vpop.f32.mrf.mxu0
      %v595 = vadd.f32 %v356, %v594
      %v596 = vpop.f32.mrf.mxu0
      %v597 = vadd.f32 %v358, %v596
      %598 = vmatprep.mubr.f32.mxu0 0.0
      %v599 = vand.u32 %v215, 4294901760
      %600 = vmatmul.mubr.f32.gmra.mxu0 %v599
      %v601 = vpop.f32.mrf.mxu0
      %v602 = vadd.f32 %v367, %v601
      %v603 = vpop.f32.mrf.mxu0
      %v604 = vadd.f32 %v369, %v603
      %605 = vmatprep.mubr.f32.mxu0 0.0
      %v606 = vand.u32 %v218, 4294901760
      %607 = vmatmul.mubr.f32.gmra.mxu0 %v606
      %v608 = vpop.f32.mrf.mxu0
      %v609 = vadd.f32 %v378, %v608
      %v610 = vpop.f32.mrf.mxu0
      %v611 = vadd.f32 %v380, %v610
      %612 = vmatprep.mubr.f32.mxu0 0.0
      %v613 = vand.u32 %v221, 4294901760
      %614 = vmatmul.mubr.f32.gmra.mxu0 %v613
      %v615 = vpop.f32.mrf.mxu0
      %v616 = vadd.f32 %v389, %v615
      %v617 = vpop.f32.mrf.mxu0
      %v618 = vadd.f32 %v391, %v617
      %619 = vmatprep.mubr.f32.mxu0 0.0
      %v620 = vand.u32 %v224, 4294901760
      %621 = vmatmul.mubr.f32.gmra.mxu0 %v620
      %v622 = vpop.f32.mrf.mxu0
      %v623 = vadd.f32 %v400, %v622
      %v624 = vpop.f32.mrf.mxu0
      %v625 = vadd.f32 %v402, %v624
      %626 = vmatprep.mubr.f32.mxu0 0.0
      %v627 = vand.u32 %v227, 4294901760
      %628 = vmatmul.mubr.f32.gmra.mxu0 %v627
      %v629 = vpop.f32.mrf.mxu0
      %v630 = vadd.f32 %v411, %v629
      %v631 = vpop.f32.mrf.mxu0
      %v632 = vadd.f32 %v413, %v631
      %633 = vmatprep.mubr.f32.mxu0 0.0
      %v634 = vand.u32 %v230, 4294901760
      %635 = vmatmul.mubr.f32.gmra.mxu0 %v634
      %v636 = vpop.f32.mrf.mxu0
      %v637 = vadd.f32 %v422, %v636
      %v638 = vpop.f32.mrf.mxu0
      %v639 = vadd.f32 %v424, %v638
      %640 = vmatprep.mubr.f32.mxu0 0.0
      %v641 = vand.u32 %v233, 4294901760
      %642 = vmatmul.mubr.f32.gmra.mxu0 %v641
      %v643 = vpop.f32.mrf.mxu0
      %v644 = vadd.f32 %v433, %v643
      %v645 = vpop.f32.mrf.mxu0
      %v646 = vadd.f32 %v435, %v645
      %647 = vmatprep.mubr.f32.mxu0 0.0
      %v648 = vand.u32 %v236, 4294901760
      %649 = vmatmul.mubr.f32.gmra.mxu0 %v648
      %v650 = vpop.f32.mrf.mxu0
      %v651 = vadd.f32 %v444, %v650
      %v652 = vpop.f32.mrf.mxu0
      %v653 = vadd.f32 %v446, %v652
      %654 = vmatprep.mubr.f32.mxu0 0.0
      %v655 = vand.u32 %v239, 4294901760
      %656 = vmatmul.mubr.f32.gmra.mxu0 %v655
      %v657 = vpop.f32.mrf.mxu0
      %v658 = vadd.f32 %v455, %v657
      %v659 = vpop.f32.mrf.mxu0
      %v660 = vadd.f32 %v457, %v659
      %661 = vmatprep.mubr.f32.mxu0 0.0
      %v662 = vand.u32 %v242, 4294901760
      %663 = vmatmul.mubr.f32.gmra.mxu0 %v662
      %v664 = vpop.f32.mrf.mxu0
      %v665 = vadd.f32 %v466, %v664
      %v666 = vpop.f32.mrf.mxu0
      %v667 = vadd.f32 %v468, %v666
      %668 = vmatprep.mubr.f32.mxu0 0.0
      %v669 = vand.u32 %v245, 4294901760
      %670 = vmatmul.mubr.f32.gmra.mxu0 %v669
      %v671 = vpop.f32.mrf.mxu0
      %v672 = vadd.f32 %v477, %v671
      %v673 = vpop.f32.mrf.mxu0
      %v674 = vadd.f32 %v479, %v673
      %675 = vmatprep.mubr.f32.mxu0 0.0
      %v676 = vand.u32 %v248, 4294901760
      %677 = vmatmul.mubr.f32.gmra.mxu0 %v676
      %v678 = vpop.f32.mrf.mxu0
      %v679 = vadd.f32 %v488, %v678
      %v680 = vpop.f32.mrf.mxu0
      %v681 = vadd.f32 %v490, %v680
      %682 = vmatprep.mubr.f32.mxu0 0.0
      %v683 = vand.u32 %v251, 4294901760
      %684 = vmatmul.mubr.f32.gmra.mxu0 %v683
      %v685 = vpop.f32.mrf.mxu0
      %v686 = vadd.f32 %v499, %v685
      %v687 = vpop.f32.mrf.mxu0
      %v688 = vadd.f32 %v501, %v687
      %689 = vdwg.mxu0
      %690 = vmatprep.subr.mxu0 0.0
      %691 = vmatpush1.msra.mxu0 0.0
      %692 = vmatprep.subr.mxu0 0.0
      %693 = vmatpush1.msra.mxu0 0.0
      %694 = vmatprep.subr.mxu0 0.0
      %695 = vmatpush1.msra.mxu0 0.0
      %696 = vmatprep.subr.mxu0 0.0
      %697 = vmatpush1.msra.mxu0 0.0
      %698 = vmatprep.subr.mxu0 0.0
      %699 = vmatpush1.msra.mxu0 0.0
      %700 = vmatprep.subr.mxu0 0.0
      %701 = vmatpush1.msra.mxu0 0.0
      %702 = vmatprep.subr.mxu0 0.0
      %703 = vmatpush1.msra.mxu0 0.0
      %704 = vmatprep.subr.mxu0 0.0
      %705 = vmatpush1.msra.mxu0 0.0
      %706 = vmatprep.subr.mxu0 0.0
      %707 = vmatpush1.msra.mxu0 0.0
      %708 = vmatprep.subr.mxu0 0.0
      %709 = vmatpush1.msra.mxu0 0.0
      %710 = vmatprep.subr.mxu0 0.0
      %711 = vmatpush1.msra.mxu0 0.0
      %712 = vmatprep.subr.mxu0 0.0
      %713 = vmatpush1.msra.mxu0 0.0
      %714 = vmatprep.subr.mxu0 0.0
      %715 = vmatpush1.msra.mxu0 0.0
      %716 = vmatprep.subr.mxu0 0.0
      %717 = vmatpush1.msra.mxu0 0.0
      %718 = vmatprep.subr.mxu0 0.0
      %719 = vmatpush1.msra.mxu0 0.0
      %v720 = vand.u32 %v256, 4294901760
      %v721 = vsub.f32 %v256, %v720
      %722 = vmatprep.subr.mxu0 %v721
      %v723 = vand.u32 %v254, 4294901760
      %v724 = vsub.f32 %v254, %v723
      %725 = vmatpush1.msra.mxu0 %v724
      %726 = vmatprep.subr.mxu0 0.0
      %727 = vmatpush2.msra.mxu0 0.0
      %728 = vmatprep.subr.mxu0 0.0
      %729 = vmatpush2.msra.mxu0 0.0
      %730 = vmatprep.subr.mxu0 0.0
      %731 = vmatpush2.msra.mxu0 0.0
      %732 = vmatprep.subr.mxu0 0.0
      %733 = vmatpush2.msra.mxu0 0.0
      %734 = vmatprep.subr.mxu0 0.0
      %735 = vmatpush2.msra.mxu0 0.0
      %736 = vmatprep.subr.mxu0 0.0
      %737 = vmatpush2.msra.mxu0 0.0
      %738 = vmatprep.subr.mxu0 0.0
      %739 = vmatpush2.msra.mxu0 0.0
      %740 = vmatprep.subr.mxu0 0.0
      %741 = vmatpush2.msra.mxu0 0.0
      %742 = vmatprep.subr.mxu0 0.0
      %743 = vmatpush2.msra.mxu0 0.0
      %744 = vmatprep.subr.mxu0 0.0
      %745 = vmatpush2.msra.mxu0 0.0
      %746 = vmatprep.subr.mxu0 0.0
      %747 = vmatpush2.msra.mxu0 0.0
      %748 = vmatprep.subr.mxu0 0.0
      %749 = vmatpush2.msra.mxu0 0.0
      %750 = vmatprep.subr.mxu0 0.0
      %751 = vmatpush2.msra.mxu0 0.0
      %752 = vmatprep.subr.mxu0 0.0
      %753 = vmatpush2.msra.mxu0 0.0
      %754 = vmatprep.subr.mxu0 0.0
      %755 = vmatpush2.msra.mxu0 0.0
      %756 = vmatprep.subr.mxu0 0.0
      %757 = vmatpush2.msra.mxu0 0.0
      %758 = vmatprep.mubr.f32.mxu0 0.0
      %v759 = vand.u32 %v206, 4294901760
      %v760 = vsub.f32 %v206, %v759
      %761 = vmatmul.mubr.f32.gmra.mxu0 %v760
      %v762 = vpop.f32.mrf.mxu0
      %v763 = vadd.f32 %v581, %v762
      %v764 = vpop.f32.mrf.mxu0
      %v765 = vadd.f32 %v583, %v764
      %766 = vmatprep.mubr.f32.mxu0 0.0
      %v767 = vand.u32 %v209, 4294901760
      %v768 = vsub.f32 %v209, %v767
      %769 = vmatmul.mubr.f32.gmra.mxu0 %v768
      %v770 = vpop.f32.mrf.mxu0
      %v771 = vadd.f32 %v588, %v770
      %v772 = vpop.f32.mrf.mxu0
      %v773 = vadd.f32 %v590, %v772
      %774 = vmatprep.mubr.f32.mxu0 0.0
      %v775 = vand.u32 %v212, 4294901760
      %v776 = vsub.f32 %v212, %v775
      %777 = vmatmul.mubr.f32.gmra.mxu0 %v776
      %v778 = vpop.f32.mrf.mxu0
      %v779 = vadd.f32 %v595, %v778
      %v780 = vpop.f32.mrf.mxu0
      %v781 = vadd.f32 %v597, %v780
      %782 = vmatprep.mubr.f32.mxu0 0.0
      %v783 = vand.u32 %v215, 4294901760
      %v784 = vsub.f32 %v215, %v783
      %785 = vmatmul.mubr.f32.gmra.mxu0 %v784
      %v786 = vpop.f32.mrf.mxu0
      %v787 = vadd.f32 %v602, %v786
      %v788 = vpop.f32.mrf.mxu0
      %v789 = vadd.f32 %v604, %v788
      %790 = vmatprep.mubr.f32.mxu0 0.0
      %v791 = vand.u32 %v218, 4294901760
      %v792 = vsub.f32 %v218, %v791
      %793 = vmatmul.mubr.f32.gmra.mxu0 %v792
      %v794 = vpop.f32.mrf.mxu0
      %v795 = vadd.f32 %v609, %v794
      %v796 = vpop.f32.mrf.mxu0
      %v797 = vadd.f32 %v611, %v796
      %798 = vmatprep.mubr.f32.mxu0 0.0
      %v799 = vand.u32 %v221, 4294901760
      %v800 = vsub.f32 %v221, %v799
      %801 = vmatmul.mubr.f32.gmra.mxu0 %v800
      %v802 = vpop.f32.mrf.mxu0
      %v803 = vadd.f32 %v616, %v802
      %v804 = vpop.f32.mrf.mxu0
      %v805 = vadd.f32 %v618, %v804
      %806 = vmatprep.mubr.f32.mxu0 0.0
      %v807 = vand.u32 %v224, 4294901760
      %v808 = vsub.f32 %v224, %v807
      %809 = vmatmul.mubr.f32.gmra.mxu0 %v808
      %v810 = vpop.f32.mrf.mxu0
      %v811 = vadd.f32 %v623, %v810
      %v812 = vpop.f32.mrf.mxu0
      %v813 = vadd.f32 %v625, %v812
      %814 = vmatprep.mubr.f32.mxu0 0.0
      %v815 = vand.u32 %v227, 4294901760
      %v816 = vsub.f32 %v227, %v815
      %817 = vmatmul.mubr.f32.gmra.mxu0 %v816
      %v818 = vpop.f32.mrf.mxu0
      %v819 = vadd.f32 %v630, %v818
      %v820 = vpop.f32.mrf.mxu0
      %v821 = vadd.f32 %v632, %v820
      %822 = vmatprep.mubr.f32.mxu0 0.0
      %v823 = vand.u32 %v230, 4294901760
      %v824 = vsub.f32 %v230, %v823
      %825 = vmatmul.mubr.f32.gmra.mxu0 %v824
      %v826 = vpop.f32.mrf.mxu0
      %v827 = vadd.f32 %v637, %v826
      %v828 = vpop.f32.mrf.mxu0
      %v829 = vadd.f32 %v639, %v828
      %830 = vmatprep.mubr.f32.mxu0 0.0
      %v831 = vand.u32 %v233, 4294901760
      %v832 = vsub.f32 %v233, %v831
      %833 = vmatmul.mubr.f32.gmra.mxu0 %v832
      %v834 = vpop.f32.mrf.mxu0
      %v835 = vadd.f32 %v644, %v834
      %v836 = vpop.f32.mrf.mxu0
      %v837 = vadd.f32 %v646, %v836
      %838 = vmatprep.mubr.f32.mxu0 0.0
      %v839 = vand.u32 %v236, 4294901760
      %v840 = vsub.f32 %v236, %v839
      %841 = vmatmul.mubr.f32.gmra.mxu0 %v840
      %v842 = vpop.f32.mrf.mxu0
      %v843 = vadd.f32 %v651, %v842
      %v844 = vpop.f32.mrf.mxu0
      %v845 = vadd.f32 %v653, %v844
      %846 = vmatprep.mubr.f32.mxu0 0.0
      %v847 = vand.u32 %v239, 4294901760
      %v848 = vsub.f32 %v239, %v847
      %849 = vmatmul.mubr.f32.gmra.mxu0 %v848
      %v850 = vpop.f32.mrf.mxu0
      %v851 = vadd.f32 %v658, %v850
      %v852 = vpop.f32.mrf.mxu0
      %v853 = vadd.f32 %v660, %v852
      %854 = vmatprep.mubr.f32.mxu0 0.0
      %v855 = vand.u32 %v242, 4294901760
      %v856 = vsub.f32 %v242, %v855
      %857 = vmatmul.mubr.f32.gmra.mxu0 %v856
      %v858 = vpop.f32.mrf.mxu0
      %v859 = vadd.f32 %v665, %v858
      %v860 = vpop.f32.mrf.mxu0
      %v861 = vadd.f32 %v667, %v860
      %862 = vmatprep.mubr.f32.mxu0 0.0
      %v863 = vand.u32 %v245, 4294901760
      %v864 = vsub.f32 %v245, %v863
      %865 = vmatmul.mubr.f32.gmra.mxu0 %v864
      %v866 = vpop.f32.mrf.mxu0
      %v867 = vadd.f32 %v672, %v866
      %v868 = vpop.f32.mrf.mxu0
      %v869 = vadd.f32 %v674, %v868
      %870 = vmatprep.mubr.f32.mxu0 0.0
      %v871 = vand.u32 %v248, 4294901760
      %v872 = vsub.f32 %v248, %v871
      %873 = vmatmul.mubr.f32.gmra.mxu0 %v872
      %v874 = vpop.f32.mrf.mxu0
      %v875 = vadd.f32 %v679, %v874
      %v876 = vpop.f32.mrf.mxu0
      %v877 = vadd.f32 %v681, %v876
      %878 = vmatprep.mubr.f32.mxu0 0.0
      %v879 = vand.u32 %v251, 4294901760
      %v880 = vsub.f32 %v251, %v879
      %881 = vmatmul.mubr.f32.gmra.mxu0 %v880
      %v882 = vpop.f32.mrf.mxu0
      %v883 = vadd.f32 %v686, %v882
      %v884 = vpop.f32.mrf.mxu0
      %v885 = vadd.f32 %v688, %v884
      %886 = vdwg.mxu0
      %887 = vmatprep.subr.mxu0 0.0
      %888 = vmatpush1.msra.mxu0 0.0
      %889 = vmatprep.subr.mxu0 0.0
      %890 = vmatpush1.msra.mxu0 0.0
      %891 = vmatprep.subr.mxu0 0.0
      %892 = vmatpush1.msra.mxu0 0.0
      %893 = vmatprep.subr.mxu0 0.0
      %894 = vmatpush1.msra.mxu0 0.0
      %895 = vmatprep.subr.mxu0 0.0
      %896 = vmatpush1.msra.mxu0 0.0
      %897 = vmatprep.subr.mxu0 0.0
      %898 = vmatpush1.msra.mxu0 0.0
      %899 = vmatprep.subr.mxu0 0.0
      %900 = vmatpush1.msra.mxu0 0.0
      %901 = vmatprep.subr.mxu0 0.0
      %902 = vmatpush1.msra.mxu0 0.0
      %903 = vmatprep.subr.mxu0 0.0
      %904 = vmatpush1.msra.mxu0 0.0
      %905 = vmatprep.subr.mxu0 0.0
      %906 = vmatpush1.msra.mxu0 0.0
      %907 = vmatprep.subr.mxu0 0.0
      %908 = vmatpush1.msra.mxu0 0.0
      %909 = vmatprep.subr.mxu0 0.0
      %910 = vmatpush1.msra.mxu0 0.0
      %911 = vmatprep.subr.mxu0 0.0
      %912 = vmatpush1.msra.mxu0 0.0
      %913 = vmatprep.subr.mxu0 0.0
      %914 = vmatpush1.msra.mxu0 0.0
      %915 = vmatprep.subr.mxu0 0.0
      %916 = vmatpush1.msra.mxu0 0.0
      %v917 = vand.u32 %v256, 4294901760
      %918 = vmatprep.subr.mxu0 %v917
      %v919 = vand.u32 %v254, 4294901760
      %920 = vmatpush1.msra.mxu0 %v919
      %921 = vmatprep.subr.mxu0 0.0
      %922 = vmatpush2.msra.mxu0 0.0
      %923 = vmatprep.subr.mxu0 0.0
      %924 = vmatpush2.msra.mxu0 0.0
      %925 = vmatprep.subr.mxu0 0.0
      %926 = vmatpush2.msra.mxu0 0.0
      %927 = vmatprep.subr.mxu0 0.0
      %928 = vmatpush2.msra.mxu0 0.0
      %929 = vmatprep.subr.mxu0 0.0
      %930 = vmatpush2.msra.mxu0 0.0
      %931 = vmatprep.subr.mxu0 0.0
      %932 = vmatpush2.msra.mxu0 0.0
      %933 = vmatprep.subr.mxu0 0.0
      %934 = vmatpush2.msra.mxu0 0.0
      %935 = vmatprep.subr.mxu0 0.0
      %936 = vmatpush2.msra.mxu0 0.0
      %937 = vmatprep.subr.mxu0 0.0
      %938 = vmatpush2.msra.mxu0 0.0
      %939 = vmatprep.subr.mxu0 0.0
      %940 = vmatpush2.msra.mxu0 0.0
      %941 = vmatprep.subr.mxu0 0.0
      %942 = vmatpush2.msra.mxu0 0.0
      %943 = vmatprep.subr.mxu0 0.0
      %944 = vmatpush2.msra.mxu0 0.0
      %945 = vmatprep.subr.mxu0 0.0
      %946 = vmatpush2.msra.mxu0 0.0
      %947 = vmatprep.subr.mxu0 0.0
      %948 = vmatpush2.msra.mxu0 0.0
      %949 = vmatprep.subr.mxu0 0.0
      %950 = vmatpush2.msra.mxu0 0.0
      %951 = vmatprep.subr.mxu0 0.0
      %952 = vmatpush2.msra.mxu0 0.0
      %953 = vmatprep.mubr.f32.mxu0 0.0
      %v954 = vand.u32 %v206, 4294901760
      %v955 = vsub.f32 %v206, %v954
      %v956 = vand.u32 %v955, 4294901760
      %957 = vmatmul.mubr.f32.gmra.mxu0 %v956
      %v958 = vpop.f32.mrf.mxu0
      %v959 = vadd.f32 %v763, %v958
      %v960 = vpop.f32.mrf.mxu0
      %v961 = vadd.f32 %v765, %v960
      %962 = vmatprep.mubr.f32.mxu0 0.0
      %v963 = vand.u32 %v209, 4294901760
      %v964 = vsub.f32 %v209, %v963
      %v965 = vand.u32 %v964, 4294901760
      %966 = vmatmul.mubr.f32.gmra.mxu0 %v965
      %v967 = vpop.f32.mrf.mxu0
      %v968 = vadd.f32 %v771, %v967
      %v969 = vpop.f32.mrf.mxu0
      %v970 = vadd.f32 %v773, %v969
      %971 = vmatprep.mubr.f32.mxu0 0.0
      %v972 = vand.u32 %v212, 4294901760
      %v973 = vsub.f32 %v212, %v972
      %v974 = vand.u32 %v973, 4294901760
      %975 = vmatmul.mubr.f32.gmra.mxu0 %v974
      %v976 = vpop.f32.mrf.mxu0
      %v977 = vadd.f32 %v779, %v976
      %v978 = vpop.f32.mrf.mxu0
      %v979 = vadd.f32 %v781, %v978
      %980 = vmatprep.mubr.f32.mxu0 0.0
      %v981 = vand.u32 %v215, 4294901760
      %v982 = vsub.f32 %v215, %v981
      %v983 = vand.u32 %v982, 4294901760
      %984 = vmatmul.mubr.f32.gmra.mxu0 %v983
      %v985 = vpop.f32.mrf.mxu0
      %v986 = vadd.f32 %v787, %v985
      %v987 = vpop.f32.mrf.mxu0
      %v988 = vadd.f32 %v789, %v987
      %989 = vmatprep.mubr.f32.mxu0 0.0
      %v990 = vand.u32 %v218, 4294901760
      %v991 = vsub.f32 %v218, %v990
      %v992 = vand.u32 %v991, 4294901760
      %993 = vmatmul.mubr.f32.gmra.mxu0 %v992
      %v994 = vpop.f32.mrf.mxu0
      %v995 = vadd.f32 %v795, %v994
      %v996 = vpop.f32.mrf.mxu0
      %v997 = vadd.f32 %v797, %v996
      %998 = vmatprep.mubr.f32.mxu0 0.0
      %v999 = vand.u32 %v221, 4294901760
      %v1000 = vsub.f32 %v221, %v999
      %v1001 = vand.u32 %v1000, 4294901760
      %1002 = vmatmul.mubr.f32.gmra.mxu0 %v1001
      %v1003 = vpop.f32.mrf.mxu0
      %v1004 = vadd.f32 %v803, %v1003
      %v1005 = vpop.f32.mrf.mxu0
      %v1006 = vadd.f32 %v805, %v1005
      %1007 = vmatprep.mubr.f32.mxu0 0.0
      %v1008 = vand.u32 %v224, 4294901760
      %v1009 = vsub.f32 %v224, %v1008
      %v1010 = vand.u32 %v1009, 4294901760
      %1011 = vmatmul.mubr.f32.gmra.mxu0 %v1010
      %v1012 = vpop.f32.mrf.mxu0
      %v1013 = vadd.f32 %v811, %v1012
      %v1014 = vpop.f32.mrf.mxu0
      %v1015 = vadd.f32 %v813, %v1014
      %1016 = vmatprep.mubr.f32.mxu0 0.0
      %v1017 = vand.u32 %v227, 4294901760
      %v1018 = vsub.f32 %v227, %v1017
      %v1019 = vand.u32 %v1018, 4294901760
      %1020 = vmatmul.mubr.f32.gmra.mxu0 %v1019
      %v1021 = vpop.f32.mrf.mxu0
      %v1022 = vadd.f32 %v819, %v1021
      %v1023 = vpop.f32.mrf.mxu0
      %v1024 = vadd.f32 %v821, %v1023
      %1025 = vmatprep.mubr.f32.mxu0 0.0
      %v1026 = vand.u32 %v230, 4294901760
      %v1027 = vsub.f32 %v230, %v1026
      %v1028 = vand.u32 %v1027, 4294901760
      %1029 = vmatmul.mubr.f32.gmra.mxu0 %v1028
      %v1030 = vpop.f32.mrf.mxu0
      %v1031 = vadd.f32 %v827, %v1030
      %v1032 = vpop.f32.mrf.mxu0
      %v1033 = vadd.f32 %v829, %v1032
      %1034 = vmatprep.mubr.f32.mxu0 0.0
      %v1035 = vand.u32 %v233, 4294901760
      %v1036 = vsub.f32 %v233, %v1035
      %v1037 = vand.u32 %v1036, 4294901760
      %1038 = vmatmul.mubr.f32.gmra.mxu0 %v1037
      %v1039 = vpop.f32.mrf.mxu0
      %v1040 = vadd.f32 %v835, %v1039
      %v1041 = vpop.f32.mrf.mxu0
      %v1042 = vadd.f32 %v837, %v1041
      %1043 = vmatprep.mubr.f32.mxu0 0.0
      %v1044 = vand.u32 %v236, 4294901760
      %v1045 = vsub.f32 %v236, %v1044
      %v1046 = vand.u32 %v1045, 4294901760
      %1047 = vmatmul.mubr.f32.gmra.mxu0 %v1046
      %v1048 = vpop.f32.mrf.mxu0
      %v1049 = vadd.f32 %v843, %v1048
      %v1050 = vpop.f32.mrf.mxu0
      %v1051 = vadd.f32 %v845, %v1050
      %1052 = vmatprep.mubr.f32.mxu0 0.0
      %v1053 = vand.u32 %v239, 4294901760
      %v1054 = vsub.f32 %v239, %v1053
      %v1055 = vand.u32 %v1054, 4294901760
      %1056 = vmatmul.mubr.f32.gmra.mxu0 %v1055
      %v1057 = vpop.f32.mrf.mxu0
      %v1058 = vadd.f32 %v851, %v1057
      %v1059 = vpop.f32.mrf.mxu0
      %v1060 = vadd.f32 %v853, %v1059
      %1061 = vmatprep.mubr.f32.mxu0 0.0
      %v1062 = vand.u32 %v242, 4294901760
      %v1063 = vsub.f32 %v242, %v1062
      %v1064 = vand.u32 %v1063, 4294901760
      %1065 = vmatmul.mubr.f32.gmra.mxu0 %v1064
      %v1066 = vpop.f32.mrf.mxu0
      %v1067 = vadd.f32 %v859, %v1066
      %v1068 = vpop.f32.mrf.mxu0
      %v1069 = vadd.f32 %v861, %v1068
      %1070 = vmatprep.mubr.f32.mxu0 0.0
      %v1071 = vand.u32 %v245, 4294901760
      %v1072 = vsub.f32 %v245, %v1071
      %v1073 = vand.u32 %v1072, 4294901760
      %1074 = vmatmul.mubr.f32.gmra.mxu0 %v1073
      %v1075 = vpop.f32.mrf.mxu0
      %v1076 = vadd.f32 %v867, %v1075
      %v1077 = vpop.f32.mrf.mxu0
      %v1078 = vadd.f32 %v869, %v1077
      %1079 = vmatprep.mubr.f32.mxu0 0.0
      %v1080 = vand.u32 %v248, 4294901760
      %v1081 = vsub.f32 %v248, %v1080
      %v1082 = vand.u32 %v1081, 4294901760
      %1083 = vmatmul.mubr.f32.gmra.mxu0 %v1082
      %v1084 = vpop.f32.mrf.mxu0
      %v1085 = vadd.f32 %v875, %v1084
      %v1086 = vpop.f32.mrf.mxu0
      %v1087 = vadd.f32 %v877, %v1086
      %1088 = vmatprep.mubr.f32.mxu0 0.0
      %v1089 = vand.u32 %v251, 4294901760
      %v1090 = vsub.f32 %v251, %v1089
      %v1091 = vand.u32 %v1090, 4294901760
      %1092 = vmatmul.mubr.f32.gmra.mxu0 %v1091
      %v1093 = vpop.f32.mrf.mxu0
      %v1094 = vadd.f32 %v883, %v1093
      %v1095 = vpop.f32.mrf.mxu0
      %v1096 = vadd.f32 %v885, %v1095
      %1097 = vdwg.mxu0
      %1098 = vmatprep.subr.mxu0 0.0
      %1099 = vmatpush1.msra.mxu0 0.0
      %1100 = vmatprep.subr.mxu0 0.0
      %1101 = vmatpush1.msra.mxu0 0.0
      %1102 = vmatprep.subr.mxu0 0.0
      %1103 = vmatpush1.msra.mxu0 0.0
      %1104 = vmatprep.subr.mxu0 0.0
      %1105 = vmatpush1.msra.mxu0 0.0
      %1106 = vmatprep.subr.mxu0 0.0
      %1107 = vmatpush1.msra.mxu0 0.0
      %1108 = vmatprep.subr.mxu0 0.0
      %1109 = vmatpush1.msra.mxu0 0.0
      %1110 = vmatprep.subr.mxu0 0.0
      %1111 = vmatpush1.msra.mxu0 0.0
      %1112 = vmatprep.subr.mxu0 0.0
      %1113 = vmatpush1.msra.mxu0 0.0
      %1114 = vmatprep.subr.mxu0 0.0
      %1115 = vmatpush1.msra.mxu0 0.0
      %1116 = vmatprep.subr.mxu0 0.0
      %1117 = vmatpush1.msra.mxu0 0.0
      %1118 = vmatprep.subr.mxu0 0.0
      %1119 = vmatpush1.msra.mxu0 0.0
      %1120 = vmatprep.subr.mxu0 0.0
      %1121 = vmatpush1.msra.mxu0 0.0
      %1122 = vmatprep.subr.mxu0 0.0
      %1123 = vmatpush1.msra.mxu0 0.0
      %1124 = vmatprep.subr.mxu0 0.0
      %1125 = vmatpush1.msra.mxu0 0.0
      %1126 = vmatprep.subr.mxu0 0.0
      %1127 = vmatpush1.msra.mxu0 0.0
      %v1128 = vand.u32 %v256, 4294901760
      %v1129 = vsub.f32 %v256, %v1128
      %v1130 = vand.u32 %v1129, 4294901760
      %1131 = vmatprep.subr.mxu0 %v1130
      %v1132 = vand.u32 %v254, 4294901760
      %v1133 = vsub.f32 %v254, %v1132
      %v1134 = vand.u32 %v1133, 4294901760
      %1135 = vmatpush1.msra.mxu0 %v1134
      %1136 = vmatprep.subr.mxu0 0.0
      %1137 = vmatpush2.msra.mxu0 0.0
      %1138 = vmatprep.subr.mxu0 0.0
      %1139 = vmatpush2.msra.mxu0 0.0
      %1140 = vmatprep.subr.mxu0 0.0
      %1141 = vmatpush2.msra.mxu0 0.0
      %1142 = vmatprep.subr.mxu0 0.0
      %1143 = vmatpush2.msra.mxu0 0.0
      %1144 = vmatprep.subr.mxu0 0.0
      %1145 = vmatpush2.msra.mxu0 0.0
      %1146 = vmatprep.subr.mxu0 0.0
      %1147 = vmatpush2.msra.mxu0 0.0
      %1148 = vmatprep.subr.mxu0 0.0
      %1149 = vmatpush2.msra.mxu0 0.0
      %1150 = vmatprep.subr.mxu0 0.0
      %1151 = vmatpush2.msra.mxu0 0.0
      %1152 = vmatprep.subr.mxu0 0.0
      %1153 = vmatpush2.msra.mxu0 0.0
      %1154 = vmatprep.subr.mxu0 0.0
      %1155 = vmatpush2.msra.mxu0 0.0
      %1156 = vmatprep.subr.mxu0 0.0
      %1157 = vmatpush2.msra.mxu0 0.0
      %1158 = vmatprep.subr.mxu0 0.0
      %1159 = vmatpush2.msra.mxu0 0.0
      %1160 = vmatprep.subr.mxu0 0.0
      %1161 = vmatpush2.msra.mxu0 0.0
      %1162 = vmatprep.subr.mxu0 0.0
      %1163 = vmatpush2.msra.mxu0 0.0
      %1164 = vmatprep.subr.mxu0 0.0
      %1165 = vmatpush2.msra.mxu0 0.0
      %1166 = vmatprep.subr.mxu0 0.0
      %1167 = vmatpush2.msra.mxu0 0.0
      %1168 = vmatprep.mubr.f32.mxu0 0.0
      %v1169 = vand.u32 %v206, 4294901760
      %1170 = vmatmul.mubr.f32.gmra.mxu0 %v1169
      %v1171 = vpop.f32.mrf.mxu0
      %v1172 = vadd.f32 %v959, %v1171
      %v1173 = vpop.f32.mrf.mxu0
      %v1174 = vadd.f32 %v961, %v1173
      %1175 = vmatprep.mubr.f32.mxu0 0.0
      %v1176 = vand.u32 %v209, 4294901760
      %1177 = vmatmul.mubr.f32.gmra.mxu0 %v1176
      %v1178 = vpop.f32.mrf.mxu0
      %v1179 = vadd.f32 %v968, %v1178
      %v1180 = vpop.f32.mrf.mxu0
      %v1181 = vadd.f32 %v970, %v1180
      %1182 = vmatprep.mubr.f32.mxu0 0.0
      %v1183 = vand.u32 %v212, 4294901760
      %1184 = vmatmul.mubr.f32.gmra.mxu0 %v1183
      %v1185 = vpop.f32.mrf.mxu0
      %v1186 = vadd.f32 %v977, %v1185
      %v1187 = vpop.f32.mrf.mxu0
      %v1188 = vadd.f32 %v979, %v1187
      %1189 = vmatprep.mubr.f32.mxu0 0.0
      %v1190 = vand.u32 %v215, 4294901760
      %1191 = vmatmul.mubr.f32.gmra.mxu0 %v1190
      %v1192 = vpop.f32.mrf.mxu0
      %v1193 = vadd.f32 %v986, %v1192
      %v1194 = vpop.f32.mrf.mxu0
      %v1195 = vadd.f32 %v988, %v1194
      %1196 = vmatprep.mubr.f32.mxu0 0.0
      %v1197 = vand.u32 %v218, 4294901760
      %1198 = vmatmul.mubr.f32.gmra.mxu0 %v1197
      %v1199 = vpop.f32.mrf.mxu0
      %v1200 = vadd.f32 %v995, %v1199
      %v1201 = vpop.f32.mrf.mxu0
      %v1202 = vadd.f32 %v997, %v1201
      %1203 = vmatprep.mubr.f32.mxu0 0.0
      %v1204 = vand.u32 %v221, 4294901760
      %1205 = vmatmul.mubr.f32.gmra.mxu0 %v1204
      %v1206 = vpop.f32.mrf.mxu0
      %v1207 = vadd.f32 %v1004, %v1206
      %v1208 = vpop.f32.mrf.mxu0
      %v1209 = vadd.f32 %v1006, %v1208
      %1210 = vmatprep.mubr.f32.mxu0 0.0
      %v1211 = vand.u32 %v224, 4294901760
      %1212 = vmatmul.mubr.f32.gmra.mxu0 %v1211
      %v1213 = vpop.f32.mrf.mxu0
      %v1214 = vadd.f32 %v1013, %v1213
      %v1215 = vpop.f32.mrf.mxu0
      %v1216 = vadd.f32 %v1015, %v1215
      %1217 = vmatprep.mubr.f32.mxu0 0.0
      %v1218 = vand.u32 %v227, 4294901760
      %1219 = vmatmul.mubr.f32.gmra.mxu0 %v1218
      %v1220 = vpop.f32.mrf.mxu0
      %v1221 = vadd.f32 %v1022, %v1220
      %v1222 = vpop.f32.mrf.mxu0
      %v1223 = vadd.f32 %v1024, %v1222
      %1224 = vmatprep.mubr.f32.mxu0 0.0
      %v1225 = vand.u32 %v230, 4294901760
      %1226 = vmatmul.mubr.f32.gmra.mxu0 %v1225
      %v1227 = vpop.f32.mrf.mxu0
      %v1228 = vadd.f32 %v1031, %v1227
      %v1229 = vpop.f32.mrf.mxu0
      %v1230 = vadd.f32 %v1033, %v1229
      %1231 = vmatprep.mubr.f32.mxu0 0.0
      %v1232 = vand.u32 %v233, 4294901760
      %1233 = vmatmul.mubr.f32.gmra.mxu0 %v1232
      %v1234 = vpop.f32.mrf.mxu0
      %v1235 = vadd.f32 %v1040, %v1234
      %v1236 = vpop.f32.mrf.mxu0
      %v1237 = vadd.f32 %v1042, %v1236
      %1238 = vmatprep.mubr.f32.mxu0 0.0
      %v1239 = vand.u32 %v236, 4294901760
      %1240 = vmatmul.mubr.f32.gmra.mxu0 %v1239
      %v1241 = vpop.f32.mrf.mxu0
      %v1242 = vadd.f32 %v1049, %v1241
      %v1243 = vpop.f32.mrf.mxu0
      %v1244 = vadd.f32 %v1051, %v1243
      %1245 = vmatprep.mubr.f32.mxu0 0.0
      %v1246 = vand.u32 %v239, 4294901760
      %1247 = vmatmul.mubr.f32.gmra.mxu0 %v1246
      %v1248 = vpop.f32.mrf.mxu0
      %v1249 = vadd.f32 %v1058, %v1248
      %v1250 = vpop.f32.mrf.mxu0
      %v1251 = vadd.f32 %v1060, %v1250
      %1252 = vmatprep.mubr.f32.mxu0 0.0
      %v1253 = vand.u32 %v242, 4294901760
      %1254 = vmatmul.mubr.f32.gmra.mxu0 %v1253
      %v1255 = vpop.f32.mrf.mxu0
      %v1256 = vadd.f32 %v1067, %v1255
      %v1257 = vpop.f32.mrf.mxu0
      %v1258 = vadd.f32 %v1069, %v1257
      %1259 = vmatprep.mubr.f32.mxu0 0.0
      %v1260 = vand.u32 %v245, 4294901760
      %1261 = vmatmul.mubr.f32.gmra.mxu0 %v1260
      %v1262 = vpop.f32.mrf.mxu0
      %v1263 = vadd.f32 %v1076, %v1262
      %v1264 = vpop.f32.mrf.mxu0
      %v1265 = vadd.f32 %v1078, %v1264
      %1266 = vmatprep.mubr.f32.mxu0 0.0
      %v1267 = vand.u32 %v248, 4294901760
      %1268 = vmatmul.mubr.f32.gmra.mxu0 %v1267
      %v1269 = vpop.f32.mrf.mxu0
      %v1270 = vadd.f32 %v1085, %v1269
      %v1271 = vpop.f32.mrf.mxu0
      %v1272 = vadd.f32 %v1087, %v1271
      %1273 = vmatprep.mubr.f32.mxu0 0.0
      %v1274 = vand.u32 %v251, 4294901760
      %1275 = vmatmul.mubr.f32.gmra.mxu0 %v1274
      %v1276 = vpop.f32.mrf.mxu0
      %v1277 = vadd.f32 %v1094, %v1276
      %v1278 = vpop.f32.mrf.mxu0
      %v1279 = vadd.f32 %v1096, %v1278
      %1280 = vdwg.mxu0
      %1281 = vmatprep.subr.mxu0 0.0
      %1282 = vmatpush1.msra.mxu0 0.0
      %1283 = vmatprep.subr.mxu0 0.0
      %1284 = vmatpush1.msra.mxu0 0.0
      %1285 = vmatprep.subr.mxu0 0.0
      %1286 = vmatpush1.msra.mxu0 0.0
      %1287 = vmatprep.subr.mxu0 0.0
      %1288 = vmatpush1.msra.mxu0 0.0
      %1289 = vmatprep.subr.mxu0 0.0
      %1290 = vmatpush1.msra.mxu0 0.0
      %1291 = vmatprep.subr.mxu0 0.0
      %1292 = vmatpush1.msra.mxu0 0.0
      %1293 = vmatprep.subr.mxu0 0.0
      %1294 = vmatpush1.msra.mxu0 0.0
      %1295 = vmatprep.subr.mxu0 0.0
      %1296 = vmatpush1.msra.mxu0 0.0
      %1297 = vmatprep.subr.mxu0 0.0
      %1298 = vmatpush1.msra.mxu0 0.0
      %1299 = vmatprep.subr.mxu0 0.0
      %1300 = vmatpush1.msra.mxu0 0.0
      %1301 = vmatprep.subr.mxu0 0.0
      %1302 = vmatpush1.msra.mxu0 0.0
      %1303 = vmatprep.subr.mxu0 0.0
      %1304 = vmatpush1.msra.mxu0 0.0
      %1305 = vmatprep.subr.mxu0 0.0
      %1306 = vmatpush1.msra.mxu0 0.0
      %1307 = vmatprep.subr.mxu0 0.0
      %1308 = vmatpush1.msra.mxu0 0.0
      %1309 = vmatprep.subr.mxu0 0.0
      %1310 = vmatpush1.msra.mxu0 0.0
      %v1311 = vand.u32 %v256, 4294901760
      %1312 = vmatprep.subr.mxu0 %v1311
      %v1313 = vand.u32 %v254, 4294901760
      %1314 = vmatpush1.msra.mxu0 %v1313
      %1315 = vmatprep.subr.mxu0 0.0
      %1316 = vmatpush2.msra.mxu0 0.0
      %1317 = vmatprep.subr.mxu0 0.0
      %1318 = vmatpush2.msra.mxu0 0.0
      %1319 = vmatprep.subr.mxu0 0.0
      %1320 = vmatpush2.msra.mxu0 0.0
      %1321 = vmatprep.subr.mxu0 0.0
      %1322 = vmatpush2.msra.mxu0 0.0
      %1323 = vmatprep.subr.mxu0 0.0
      %1324 = vmatpush2.msra.mxu0 0.0
      %1325 = vmatprep.subr.mxu0 0.0
      %1326 = vmatpush2.msra.mxu0 0.0
      %1327 = vmatprep.subr.mxu0 0.0
      %1328 = vmatpush2.msra.mxu0 0.0
      %1329 = vmatprep.subr.mxu0 0.0
      %1330 = vmatpush2.msra.mxu0 0.0
      %1331 = vmatprep.subr.mxu0 0.0
      %1332 = vmatpush2.msra.mxu0 0.0
      %1333 = vmatprep.subr.mxu0 0.0
      %1334 = vmatpush2.msra.mxu0 0.0
      %1335 = vmatprep.subr.mxu0 0.0
      %1336 = vmatpush2.msra.mxu0 0.0
      %1337 = vmatprep.subr.mxu0 0.0
      %1338 = vmatpush2.msra.mxu0 0.0
      %1339 = vmatprep.subr.mxu0 0.0
      %1340 = vmatpush2.msra.mxu0 0.0
      %1341 = vmatprep.subr.mxu0 0.0
      %1342 = vmatpush2.msra.mxu0 0.0
      %1343 = vmatprep.subr.mxu0 0.0
      %1344 = vmatpush2.msra.mxu0 0.0
      %1345 = vmatprep.subr.mxu0 0.0
      %1346 = vmatpush2.msra.mxu0 0.0
      %1347 = vmatprep.mubr.f32.mxu0 0.0
      %v1348 = vand.u32 %v206, 4294901760
      %1349 = vmatmul.mubr.f32.gmra.mxu0 %v1348
      %v1350 = vpop.f32.mrf.mxu0
      %v1351 = vadd.f32 %v1172, %v1350
      %v1352 = vpop.f32.mrf.mxu0
      %v1353 = vadd.f32 %v1174, %v1352
      %1354 = vmatprep.mubr.f32.mxu0 0.0
      %v1355 = vand.u32 %v209, 4294901760
      %1356 = vmatmul.mubr.f32.gmra.mxu0 %v1355
      %v1357 = vpop.f32.mrf.mxu0
      %v1358 = vadd.f32 %v1179, %v1357
      %v1359 = vpop.f32.mrf.mxu0
      %v1360 = vadd.f32 %v1181, %v1359
      %1361 = vmatprep.mubr.f32.mxu0 0.0
      %v1362 = vand.u32 %v212, 4294901760
      %1363 = vmatmul.mubr.f32.gmra.mxu0 %v1362
      %v1364 = vpop.f32.mrf.mxu0
      %v1365 = vadd.f32 %v1186, %v1364
      %v1366 = vpop.f32.mrf.mxu0
      %v1367 = vadd.f32 %v1188, %v1366
      %1368 = vmatprep.mubr.f32.mxu0 0.0
      %v1369 = vand.u32 %v215, 4294901760
      %1370 = vmatmul.mubr.f32.gmra.mxu0 %v1369
      %v1371 = vpop.f32.mrf.mxu0
      %v1372 = vadd.f32 %v1193, %v1371
      %v1373 = vpop.f32.mrf.mxu0
      %v1374 = vadd.f32 %v1195, %v1373
      %1375 = vmatprep.mubr.f32.mxu0 0.0
      %v1376 = vand.u32 %v218, 4294901760
      %1377 = vmatmul.mubr.f32.gmra.mxu0 %v1376
      %v1378 = vpop.f32.mrf.mxu0
      %v1379 = vadd.f32 %v1200, %v1378
      %v1380 = vpop.f32.mrf.mxu0
      %v1381 = vadd.f32 %v1202, %v1380
      %1382 = vmatprep.mubr.f32.mxu0 0.0
      %v1383 = vand.u32 %v221, 4294901760
      %1384 = vmatmul.mubr.f32.gmra.mxu0 %v1383
      %v1385 = vpop.f32.mrf.mxu0
      %v1386 = vadd.f32 %v1207, %v1385
      %v1387 = vpop.f32.mrf.mxu0
      %v1388 = vadd.f32 %v1209, %v1387
      %1389 = vmatprep.mubr.f32.mxu0 0.0
      %v1390 = vand.u32 %v224, 4294901760
      %1391 = vmatmul.mubr.f32.gmra.mxu0 %v1390
      %v1392 = vpop.f32.mrf.mxu0
      %v1393 = vadd.f32 %v1214, %v1392
      %v1394 = vpop.f32.mrf.mxu0
      %v1395 = vadd.f32 %v1216, %v1394
      %1396 = vmatprep.mubr.f32.mxu0 0.0
      %v1397 = vand.u32 %v227, 4294901760
      %1398 = vmatmul.mubr.f32.gmra.mxu0 %v1397
      %v1399 = vpop.f32.mrf.mxu0
      %v1400 = vadd.f32 %v1221, %v1399
      %v1401 = vpop.f32.mrf.mxu0
      %v1402 = vadd.f32 %v1223, %v1401
      %1403 = vmatprep.mubr.f32.mxu0 0.0
      %v1404 = vand.u32 %v230, 4294901760
      %1405 = vmatmul.mubr.f32.gmra.mxu0 %v1404
      %v1406 = vpop.f32.mrf.mxu0
      %v1407 = vadd.f32 %v1228, %v1406
      %v1408 = vpop.f32.mrf.mxu0
      %v1409 = vadd.f32 %v1230, %v1408
      %1410 = vmatprep.mubr.f32.mxu0 0.0
      %v1411 = vand.u32 %v233, 4294901760
      %1412 = vmatmul.mubr.f32.gmra.mxu0 %v1411
      %v1413 = vpop.f32.mrf.mxu0
      %v1414 = vadd.f32 %v1235, %v1413
      %v1415 = vpop.f32.mrf.mxu0
      %v1416 = vadd.f32 %v1237, %v1415
      %1417 = vmatprep.mubr.f32.mxu0 0.0
      %v1418 = vand.u32 %v236, 4294901760
      %1419 = vmatmul.mubr.f32.gmra.mxu0 %v1418
      %v1420 = vpop.f32.mrf.mxu0
      %v1421 = vadd.f32 %v1242, %v1420
      %v1422 = vpop.f32.mrf.mxu0
      %v1423 = vadd.f32 %v1244, %v1422
      %1424 = vmatprep.mubr.f32.mxu0 0.0
      %v1425 = vand.u32 %v239, 4294901760
      %1426 = vmatmul.mubr.f32.gmra.mxu0 %v1425
      %v1427 = vpop.f32.mrf.mxu0
      %v1428 = vadd.f32 %v1249, %v1427
      %v1429 = vpop.f32.mrf.mxu0
      %v1430 = vadd.f32 %v1251, %v1429
      %1431 = vmatprep.mubr.f32.mxu0 0.0
      %v1432 = vand.u32 %v242, 4294901760
      %1433 = vmatmul.mubr.f32.gmra.mxu0 %v1432
      %v1434 = vpop.f32.mrf.mxu0
      %v1435 = vadd.f32 %v1256, %v1434
      %v1436 = vpop.f32.mrf.mxu0
      %v1437 = vadd.f32 %v1258, %v1436
      %1438 = vmatprep.mubr.f32.mxu0 0.0
      %v1439 = vand.u32 %v245, 4294901760
      %1440 = vmatmul.mubr.f32.gmra.mxu0 %v1439
      %v1441 = vpop.f32.mrf.mxu0
      %v1442 = vadd.f32 %v1263, %v1441
      %v1443 = vpop.f32.mrf.mxu0
      %v1444 = vadd.f32 %v1265, %v1443
      %1445 = vmatprep.mubr.f32.mxu0 0.0
      %v1446 = vand.u32 %v248, 4294901760
      %1447 = vmatmul.mubr.f32.gmra.mxu0 %v1446
      %v1448 = vpop.f32.mrf.mxu0
      %v1449 = vadd.f32 %v1270, %v1448
      %v1450 = vpop.f32.mrf.mxu0
      %v1451 = vadd.f32 %v1272, %v1450
      %1452 = vmatprep.mubr.f32.mxu0 0.0
      %v1453 = vand.u32 %v251, 4294901760
      %1454 = vmatmul.mubr.f32.gmra.mxu0 %v1453
      %v1455 = vpop.f32.mrf.mxu0
      %v1456 = vadd.f32 %v1277, %v1455
      %v1457 = vpop.f32.mrf.mxu0
      %v1458 = vadd.f32 %v1279, %v1457
      %1459 = vdwg.mxu0
      %1460 = vmatprep.subr.mxu0 0.0
      %1461 = vmatpush1.msra.mxu0 0.0
      %1462 = vmatprep.subr.mxu0 0.0
      %1463 = vmatpush1.msra.mxu0 0.0
      %1464 = vmatprep.subr.mxu0 0.0
      %1465 = vmatpush1.msra.mxu0 0.0
      %1466 = vmatprep.subr.mxu0 0.0
      %1467 = vmatpush1.msra.mxu0 0.0
      %1468 = vmatprep.subr.mxu0 0.0
      %1469 = vmatpush1.msra.mxu0 0.0
      %1470 = vmatprep.subr.mxu0 0.0
      %1471 = vmatpush1.msra.mxu0 0.0
      %1472 = vmatprep.subr.mxu0 0.0
      %1473 = vmatpush1.msra.mxu0 0.0
      %1474 = vmatprep.subr.mxu0 0.0
      %1475 = vmatpush1.msra.mxu0 0.0
      %1476 = vmatprep.subr.mxu0 0.0
      %1477 = vmatpush1.msra.mxu0 0.0
      %1478 = vmatprep.subr.mxu0 0.0
      %1479 = vmatpush1.msra.mxu0 0.0
      %1480 = vmatprep.subr.mxu0 0.0
      %1481 = vmatpush1.msra.mxu0 0.0
      %1482 = vmatprep.subr.mxu0 0.0
      %1483 = vmatpush1.msra.mxu0 0.0
      %1484 = vmatprep.subr.mxu0 0.0
      %1485 = vmatpush1.msra.mxu0 0.0
      %1486 = vmatprep.subr.mxu0 0.0
      %1487 = vmatpush1.msra.mxu0 0.0
      %1488 = vmatprep.subr.mxu0 0.0
      %1489 = vmatpush1.msra.mxu0 0.0
      %1490 = vmatprep.subr.mxu0 0.0
      %v1491 = vand.u32 %v258, 4294901760
      %1492 = vmatpush1.msra.mxu0 %v1491
      %1493 = vmatprep.subr.mxu0 0.0
      %1494 = vmatpush2.msra.mxu0 0.0
      %1495 = vmatprep.subr.mxu0 0.0
      %1496 = vmatpush2.msra.mxu0 0.0
      %1497 = vmatprep.subr.mxu0 0.0
      %1498 = vmatpush2.msra.mxu0 0.0
      %1499 = vmatprep.subr.mxu0 0.0
      %1500 = vmatpush2.msra.mxu0 0.0
      %1501 = vmatprep.subr.mxu0 0.0
      %1502 = vmatpush2.msra.mxu0 0.0
      %1503 = vmatprep.subr.mxu0 0.0
      %1504 = vmatpush2.msra.mxu0 0.0
      %1505 = vmatprep.subr.mxu0 0.0
      %1506 = vmatpush2.msra.mxu0 0.0
      %1507 = vmatprep.subr.mxu0 0.0
      %1508 = vmatpush2.msra.mxu0 0.0
      %1509 = vmatprep.subr.mxu0 0.0
      %1510 = vmatpush2.msra.mxu0 0.0
      %1511 = vmatprep.subr.mxu0 0.0
      %1512 = vmatpush2.msra.mxu0 0.0
      %1513 = vmatprep.subr.mxu0 0.0
      %1514 = vmatpush2.msra.mxu0 0.0
      %1515 = vmatprep.subr.mxu0 0.0
      %1516 = vmatpush2.msra.mxu0 0.0
      %1517 = vmatprep.subr.mxu0 0.0
      %1518 = vmatpush2.msra.mxu0 0.0
      %1519 = vmatprep.subr.mxu0 0.0
      %1520 = vmatpush2.msra.mxu0 0.0
      %1521 = vmatprep.subr.mxu0 0.0
      %1522 = vmatpush2.msra.mxu0 0.0
      %1523 = vmatprep.subr.mxu0 0.0
      %1524 = vmatpush2.msra.mxu0 0.0
      %1525 = vmatprep.mubr.f32.mxu0 0.0
      %v1526 = vand.u32 %v206, 4294901760
      %v1527 = vsub.f32 %v206, %v1526
      %v1528 = vand.u32 %v1527, 4294901760
      %v1529 = vsub.f32 %v1527, %v1528
      %v1530 = vand.u32 %v1529, 4294901760
      %1531 = vmatmul.mubr.f32.gmra.mxu0 %v1530
      %v1532 = vpop.f32.mrf.mxu0
      %v1533 = vadd.f32 0.0, %v1532
      %v1534 = vpop.f32.mrf.mxu0
      %1535 = vmatprep.mubr.f32.mxu0 0.0
      %v1536 = vand.u32 %v209, 4294901760
      %v1537 = vsub.f32 %v209, %v1536
      %v1538 = vand.u32 %v1537, 4294901760
      %v1539 = vsub.f32 %v1537, %v1538
      %v1540 = vand.u32 %v1539, 4294901760
      %1541 = vmatmul.mubr.f32.gmra.mxu0 %v1540
      %v1542 = vpop.f32.mrf.mxu0
      %v1543 = vadd.f32 0.0, %v1542
      %v1544 = vpop.f32.mrf.mxu0
      %1545 = vmatprep.mubr.f32.mxu0 0.0
      %v1546 = vand.u32 %v212, 4294901760
      %v1547 = vsub.f32 %v212, %v1546
      %v1548 = vand.u32 %v1547, 4294901760
      %v1549 = vsub.f32 %v1547, %v1548
      %v1550 = vand.u32 %v1549, 4294901760
      %1551 = vmatmul.mubr.f32.gmra.mxu0 %v1550
      %v1552 = vpop.f32.mrf.mxu0
      %v1553 = vadd.f32 0.0, %v1552
      %v1554 = vpop.f32.mrf.mxu0
      %1555 = vmatprep.mubr.f32.mxu0 0.0
      %v1556 = vand.u32 %v215, 4294901760
      %v1557 = vsub.f32 %v215, %v1556
      %v1558 = vand.u32 %v1557, 4294901760
      %v1559 = vsub.f32 %v1557, %v1558
      %v1560 = vand.u32 %v1559, 4294901760
      %1561 = vmatmul.mubr.f32.gmra.mxu0 %v1560
      %v1562 = vpop.f32.mrf.mxu0
      %v1563 = vadd.f32 0.0, %v1562
      %v1564 = vpop.f32.mrf.mxu0
      %1565 = vmatprep.mubr.f32.mxu0 0.0
      %v1566 = vand.u32 %v218, 4294901760
      %v1567 = vsub.f32 %v218, %v1566
      %v1568 = vand.u32 %v1567, 4294901760
      %v1569 = vsub.f32 %v1567, %v1568
      %v1570 = vand.u32 %v1569, 4294901760
      %1571 = vmatmul.mubr.f32.gmra.mxu0 %v1570
      %v1572 = vpop.f32.mrf.mxu0
      %v1573 = vadd.f32 0.0, %v1572
      %v1574 = vpop.f32.mrf.mxu0
      %1575 = vmatprep.mubr.f32.mxu0 0.0
      %v1576 = vand.u32 %v221, 4294901760
      %v1577 = vsub.f32 %v221, %v1576
      %v1578 = vand.u32 %v1577, 4294901760
      %v1579 = vsub.f32 %v1577, %v1578
      %v1580 = vand.u32 %v1579, 4294901760
      %1581 = vmatmul.mubr.f32.gmra.mxu0 %v1580
      %v1582 = vpop.f32.mrf.mxu0
      %v1583 = vadd.f32 0.0, %v1582
      %v1584 = vpop.f32.mrf.mxu0
      %1585 = vmatprep.mubr.f32.mxu0 0.0
      %v1586 = vand.u32 %v224, 4294901760
      %v1587 = vsub.f32 %v224, %v1586
      %v1588 = vand.u32 %v1587, 4294901760
      %v1589 = vsub.f32 %v1587, %v1588
      %v1590 = vand.u32 %v1589, 4294901760
      %1591 = vmatmul.mubr.f32.gmra.mxu0 %v1590
      %v1592 = vpop.f32.mrf.mxu0
      %v1593 = vadd.f32 0.0, %v1592
      %v1594 = vpop.f32.mrf.mxu0
      %1595 = vmatprep.mubr.f32.mxu0 0.0
      %v1596 = vand.u32 %v227, 4294901760
      %v1597 = vsub.f32 %v227, %v1596
      %v1598 = vand.u32 %v1597, 4294901760
      %v1599 = vsub.f32 %v1597, %v1598
      %v1600 = vand.u32 %v1599, 4294901760
      %1601 = vmatmul.mubr.f32.gmra.mxu0 %v1600
      %v1602 = vpop.f32.mrf.mxu0
      %v1603 = vadd.f32 0.0, %v1602
      %v1604 = vpop.f32.mrf.mxu0
      %1605 = vmatprep.mubr.f32.mxu0 0.0
      %v1606 = vand.u32 %v230, 4294901760
      %v1607 = vsub.f32 %v230, %v1606
      %v1608 = vand.u32 %v1607, 4294901760
      %v1609 = vsub.f32 %v1607, %v1608
      %v1610 = vand.u32 %v1609, 4294901760
      %1611 = vmatmul.mubr.f32.gmra.mxu0 %v1610
      %v1612 = vpop.f32.mrf.mxu0
      %v1613 = vadd.f32 0.0, %v1612
      %v1614 = vpop.f32.mrf.mxu0
      %1615 = vmatprep.mubr.f32.mxu0 0.0
      %v1616 = vand.u32 %v233, 4294901760
      %v1617 = vsub.f32 %v233, %v1616
      %v1618 = vand.u32 %v1617, 4294901760
      %v1619 = vsub.f32 %v1617, %v1618
      %v1620 = vand.u32 %v1619, 4294901760
      %1621 = vmatmul.mubr.f32.gmra.mxu0 %v1620
      %v1622 = vpop.f32.mrf.mxu0
      %v1623 = vadd.f32 0.0, %v1622
      %v1624 = vpop.f32.mrf.mxu0
      %1625 = vmatprep.mubr.f32.mxu0 0.0
      %v1626 = vand.u32 %v236, 4294901760
      %v1627 = vsub.f32 %v236, %v1626
      %v1628 = vand.u32 %v1627, 4294901760
      %v1629 = vsub.f32 %v1627, %v1628
      %v1630 = vand.u32 %v1629, 4294901760
      %1631 = vmatmul.mubr.f32.gmra.mxu0 %v1630
      %v1632 = vpop.f32.mrf.mxu0
      %v1633 = vadd.f32 0.0, %v1632
      %v1634 = vpop.f32.mrf.mxu0
      %1635 = vmatprep.mubr.f32.mxu0 0.0
      %v1636 = vand.u32 %v239, 4294901760
      %v1637 = vsub.f32 %v239, %v1636
      %v1638 = vand.u32 %v1637, 4294901760
      %v1639 = vsub.f32 %v1637, %v1638
      %v1640 = vand.u32 %v1639, 4294901760
      %1641 = vmatmul.mubr.f32.gmra.mxu0 %v1640
      %v1642 = vpop.f32.mrf.mxu0
      %v1643 = vadd.f32 0.0, %v1642
      %v1644 = vpop.f32.mrf.mxu0
      %1645 = vmatprep.mubr.f32.mxu0 0.0
      %v1646 = vand.u32 %v242, 4294901760
      %v1647 = vsub.f32 %v242, %v1646
      %v1648 = vand.u32 %v1647, 4294901760
      %v1649 = vsub.f32 %v1647, %v1648
      %v1650 = vand.u32 %v1649, 4294901760
      %1651 = vmatmul.mubr.f32.gmra.mxu0 %v1650
      %v1652 = vpop.f32.mrf.mxu0
      %v1653 = vadd.f32 0.0, %v1652
      %v1654 = vpop.f32.mrf.mxu0
      %1655 = vmatprep.mubr.f32.mxu0 0.0
      %v1656 = vand.u32 %v245, 4294901760
      %v1657 = vsub.f32 %v245, %v1656
      %v1658 = vand.u32 %v1657, 4294901760
      %v1659 = vsub.f32 %v1657, %v1658
      %v1660 = vand.u32 %v1659, 4294901760
      %1661 = vmatmul.mubr.f32.gmra.mxu0 %v1660
      %v1662 = vpop.f32.mrf.mxu0
      %v1663 = vadd.f32 0.0, %v1662
      %v1664 = vpop.f32.mrf.mxu0
      %1665 = vmatprep.mubr.f32.mxu0 0.0
      %v1666 = vand.u32 %v248, 4294901760
      %v1667 = vsub.f32 %v248, %v1666
      %v1668 = vand.u32 %v1667, 4294901760
      %v1669 = vsub.f32 %v1667, %v1668
      %v1670 = vand.u32 %v1669, 4294901760
      %1671 = vmatmul.mubr.f32.gmra.mxu0 %v1670
      %v1672 = vpop.f32.mrf.mxu0
      %v1673 = vadd.f32 0.0, %v1672
      %v1674 = vpop.f32.mrf.mxu0
      %1675 = vmatprep.mubr.f32.mxu0 0.0
      %v1676 = vand.u32 %v251, 4294901760
      %v1677 = vsub.f32 %v251, %v1676
      %v1678 = vand.u32 %v1677, 4294901760
      %v1679 = vsub.f32 %v1677, %v1678
      %v1680 = vand.u32 %v1679, 4294901760
      %1681 = vmatmul.mubr.f32.gmra.mxu0 %v1680
      %v1682 = vpop.f32.mrf.mxu0
      %v1683 = vadd.f32 0.0, %v1682
      %v1684 = vpop.f32.mrf.mxu0
      %1685 = vdwg.mxu0
      %1686 = vmatprep.subr.mxu0 0.0
      %1687 = vmatpush1.msra.mxu0 0.0
      %1688 = vmatprep.subr.mxu0 0.0
      %1689 = vmatpush1.msra.mxu0 0.0
      %1690 = vmatprep.subr.mxu0 0.0
      %1691 = vmatpush1.msra.mxu0 0.0
      %1692 = vmatprep.subr.mxu0 0.0
      %1693 = vmatpush1.msra.mxu0 0.0
      %1694 = vmatprep.subr.mxu0 0.0
      %1695 = vmatpush1.msra.mxu0 0.0
      %1696 = vmatprep.subr.mxu0 0.0
      %1697 = vmatpush1.msra.mxu0 0.0
      %1698 = vmatprep.subr.mxu0 0.0
      %1699 = vmatpush1.msra.mxu0 0.0
      %1700 = vmatprep.subr.mxu0 0.0
      %1701 = vmatpush1.msra.mxu0 0.0
      %1702 = vmatprep.subr.mxu0 0.0
      %1703 = vmatpush1.msra.mxu0 0.0
      %1704 = vmatprep.subr.mxu0 0.0
      %1705 = vmatpush1.msra.mxu0 0.0
      %1706 = vmatprep.subr.mxu0 0.0
      %1707 = vmatpush1.msra.mxu0 0.0
      %1708 = vmatprep.subr.mxu0 0.0
      %1709 = vmatpush1.msra.mxu0 0.0
      %1710 = vmatprep.subr.mxu0 0.0
      %1711 = vmatpush1.msra.mxu0 0.0
      %1712 = vmatprep.subr.mxu0 0.0
      %1713 = vmatpush1.msra.mxu0 0.0
      %1714 = vmatprep.subr.mxu0 0.0
      %1715 = vmatpush1.msra.mxu0 0.0
      %1716 = vmatprep.subr.mxu0 0.0
      %v1717 = vand.u32 %v258, 4294901760
      %v1718 = vsub.f32 %v258, %v1717
      %v1719 = vand.u32 %v1718, 4294901760
      %v1720 = vsub.f32 %v1718, %v1719
      %v1721 = vand.u32 %v1720, 4294901760
      %1722 = vmatpush1.msra.mxu0 %v1721
      %1723 = vmatprep.subr.mxu0 0.0
      %1724 = vmatpush2.msra.mxu0 0.0
      %1725 = vmatprep.subr.mxu0 0.0
      %1726 = vmatpush2.msra.mxu0 0.0
      %1727 = vmatprep.subr.mxu0 0.0
      %1728 = vmatpush2.msra.mxu0 0.0
      %1729 = vmatprep.subr.mxu0 0.0
      %1730 = vmatpush2.msra.mxu0 0.0
      %1731 = vmatprep.subr.mxu0 0.0
      %1732 = vmatpush2.msra.mxu0 0.0
      %1733 = vmatprep.subr.mxu0 0.0
      %1734 = vmatpush2.msra.mxu0 0.0
      %1735 = vmatprep.subr.mxu0 0.0
      %1736 = vmatpush2.msra.mxu0 0.0
      %1737 = vmatprep.subr.mxu0 0.0
      %1738 = vmatpush2.msra.mxu0 0.0
      %1739 = vmatprep.subr.mxu0 0.0
      %1740 = vmatpush2.msra.mxu0 0.0
      %1741 = vmatprep.subr.mxu0 0.0
      %1742 = vmatpush2.msra.mxu0 0.0
      %1743 = vmatprep.subr.mxu0 0.0
      %1744 = vmatpush2.msra.mxu0 0.0
      %1745 = vmatprep.subr.mxu0 0.0
      %1746 = vmatpush2.msra.mxu0 0.0
      %1747 = vmatprep.subr.mxu0 0.0
      %1748 = vmatpush2.msra.mxu0 0.0
      %1749 = vmatprep.subr.mxu0 0.0
      %1750 = vmatpush2.msra.mxu0 0.0
      %1751 = vmatprep.subr.mxu0 0.0
      %1752 = vmatpush2.msra.mxu0 0.0
      %1753 = vmatprep.subr.mxu0 0.0
      %1754 = vmatpush2.msra.mxu0 0.0
      %1755 = vmatprep.mubr.f32.mxu0 0.0
      %v1756 = vand.u32 %v206, 4294901760
      %1757 = vmatmul.mubr.f32.gmra.mxu0 %v1756
      %v1758 = vpop.f32.mrf.mxu0
      %v1759 = vadd.f32 %v1533, %v1758
      %v1760 = vpop.f32.mrf.mxu0
      %1761 = vmatprep.mubr.f32.mxu0 0.0
      %v1762 = vand.u32 %v209, 4294901760
      %1763 = vmatmul.mubr.f32.gmra.mxu0 %v1762
      %v1764 = vpop.f32.mrf.mxu0
      %v1765 = vadd.f32 %v1543, %v1764
      %v1766 = vpop.f32.mrf.mxu0
      %1767 = vmatprep.mubr.f32.mxu0 0.0
      %v1768 = vand.u32 %v212, 4294901760
      %1769 = vmatmul.mubr.f32.gmra.mxu0 %v1768
      %v1770 = vpop.f32.mrf.mxu0
      %v1771 = vadd.f32 %v1553, %v1770
      %v1772 = vpop.f32.mrf.mxu0
      %1773 = vmatprep.mubr.f32.mxu0 0.0
      %v1774 = vand.u32 %v215, 4294901760
      %1775 = vmatmul.mubr.f32.gmra.mxu0 %v1774
      %v1776 = vpop.f32.mrf.mxu0
      %v1777 = vadd.f32 %v1563, %v1776
      %v1778 = vpop.f32.mrf.mxu0
      %1779 = vmatprep.mubr.f32.mxu0 0.0
      %v1780 = vand.u32 %v218, 4294901760
      %1781 = vmatmul.mubr.f32.gmra.mxu0 %v1780
      %v1782 = vpop.f32.mrf.mxu0
      %v1783 = vadd.f32 %v1573, %v1782
      %v1784 = vpop.f32.mrf.mxu0
      %1785 = vmatprep.mubr.f32.mxu0 0.0
      %v1786 = vand.u32 %v221, 4294901760
      %1787 = vmatmul.mubr.f32.gmra.mxu0 %v1786
      %v1788 = vpop.f32.mrf.mxu0
      %v1789 = vadd.f32 %v1583, %v1788
      %v1790 = vpop.f32.mrf.mxu0
      %1791 = vmatprep.mubr.f32.mxu0 0.0
      %v1792 = vand.u32 %v224, 4294901760
      %1793 = vmatmul.mubr.f32.gmra.mxu0 %v1792
      %v1794 = vpop.f32.mrf.mxu0
      %v1795 = vadd.f32 %v1593, %v1794
      %v1796 = vpop.f32.mrf.mxu0
      %1797 = vmatprep.mubr.f32.mxu0 0.0
      %v1798 = vand.u32 %v227, 4294901760
      %1799 = vmatmul.mubr.f32.gmra.mxu0 %v1798
      %v1800 = vpop.f32.mrf.mxu0
      %v1801 = vadd.f32 %v1603, %v1800
      %v1802 = vpop.f32.mrf.mxu0
      %1803 = vmatprep.mubr.f32.mxu0 0.0
      %v1804 = vand.u32 %v230, 4294901760
      %1805 = vmatmul.mubr.f32.gmra.mxu0 %v1804
      %v1806 = vpop.f32.mrf.mxu0
      %v1807 = vadd.f32 %v1613, %v1806
      %v1808 = vpop.f32.mrf.mxu0
      %1809 = vmatprep.mubr.f32.mxu0 0.0
      %v1810 = vand.u32 %v233, 4294901760
      %1811 = vmatmul.mubr.f32.gmra.mxu0 %v1810
      %v1812 = vpop.f32.mrf.mxu0
      %v1813 = vadd.f32 %v1623, %v1812
      %v1814 = vpop.f32.mrf.mxu0
      %1815 = vmatprep.mubr.f32.mxu0 0.0
      %v1816 = vand.u32 %v236, 4294901760
      %1817 = vmatmul.mubr.f32.gmra.mxu0 %v1816
      %v1818 = vpop.f32.mrf.mxu0
      %v1819 = vadd.f32 %v1633, %v1818
      %v1820 = vpop.f32.mrf.mxu0
      %1821 = vmatprep.mubr.f32.mxu0 0.0
      %v1822 = vand.u32 %v239, 4294901760
      %1823 = vmatmul.mubr.f32.gmra.mxu0 %v1822
      %v1824 = vpop.f32.mrf.mxu0
      %v1825 = vadd.f32 %v1643, %v1824
      %v1826 = vpop.f32.mrf.mxu0
      %1827 = vmatprep.mubr.f32.mxu0 0.0
      %v1828 = vand.u32 %v242, 4294901760
      %1829 = vmatmul.mubr.f32.gmra.mxu0 %v1828
      %v1830 = vpop.f32.mrf.mxu0
      %v1831 = vadd.f32 %v1653, %v1830
      %v1832 = vpop.f32.mrf.mxu0
      %1833 = vmatprep.mubr.f32.mxu0 0.0
      %v1834 = vand.u32 %v245, 4294901760
      %1835 = vmatmul.mubr.f32.gmra.mxu0 %v1834
      %v1836 = vpop.f32.mrf.mxu0
      %v1837 = vadd.f32 %v1663, %v1836
      %v1838 = vpop.f32.mrf.mxu0
      %1839 = vmatprep.mubr.f32.mxu0 0.0
      %v1840 = vand.u32 %v248, 4294901760
      %1841 = vmatmul.mubr.f32.gmra.mxu0 %v1840
      %v1842 = vpop.f32.mrf.mxu0
      %v1843 = vadd.f32 %v1673, %v1842
      %v1844 = vpop.f32.mrf.mxu0
      %1845 = vmatprep.mubr.f32.mxu0 0.0
      %v1846 = vand.u32 %v251, 4294901760
      %1847 = vmatmul.mubr.f32.gmra.mxu0 %v1846
      %v1848 = vpop.f32.mrf.mxu0
      %v1849 = vadd.f32 %v1683, %v1848
      %v1850 = vpop.f32.mrf.mxu0
      %1851 = vdwg.mxu0
      %1852 = vmatprep.subr.mxu0 0.0
      %1853 = vmatpush1.msra.mxu0 0.0
      %1854 = vmatprep.subr.mxu0 0.0
      %1855 = vmatpush1.msra.mxu0 0.0
      %1856 = vmatprep.subr.mxu0 0.0
      %1857 = vmatpush1.msra.mxu0 0.0
      %1858 = vmatprep.subr.mxu0 0.0
      %1859 = vmatpush1.msra.mxu0 0.0
      %1860 = vmatprep.subr.mxu0 0.0
      %1861 = vmatpush1.msra.mxu0 0.0
      %1862 = vmatprep.subr.mxu0 0.0
      %1863 = vmatpush1.msra.mxu0 0.0
      %1864 = vmatprep.subr.mxu0 0.0
      %1865 = vmatpush1.msra.mxu0 0.0
      %1866 = vmatprep.subr.mxu0 0.0
      %1867 = vmatpush1.msra.mxu0 0.0
      %1868 = vmatprep.subr.mxu0 0.0
      %1869 = vmatpush1.msra.mxu0 0.0
      %1870 = vmatprep.subr.mxu0 0.0
      %1871 = vmatpush1.msra.mxu0 0.0
      %1872 = vmatprep.subr.mxu0 0.0
      %1873 = vmatpush1.msra.mxu0 0.0
      %1874 = vmatprep.subr.mxu0 0.0
      %1875 = vmatpush1.msra.mxu0 0.0
      %1876 = vmatprep.subr.mxu0 0.0
      %1877 = vmatpush1.msra.mxu0 0.0
      %1878 = vmatprep.subr.mxu0 0.0
      %1879 = vmatpush1.msra.mxu0 0.0
      %1880 = vmatprep.subr.mxu0 0.0
      %1881 = vmatpush1.msra.mxu0 0.0
      %1882 = vmatprep.subr.mxu0 0.0
      %v1883 = vand.u32 %v258, 4294901760
      %v1884 = vsub.f32 %v258, %v1883
      %1885 = vmatpush1.msra.mxu0 %v1884
      %1886 = vmatprep.subr.mxu0 0.0
      %1887 = vmatpush2.msra.mxu0 0.0
      %1888 = vmatprep.subr.mxu0 0.0
      %1889 = vmatpush2.msra.mxu0 0.0
      %1890 = vmatprep.subr.mxu0 0.0
      %1891 = vmatpush2.msra.mxu0 0.0
      %1892 = vmatprep.subr.mxu0 0.0
      %1893 = vmatpush2.msra.mxu0 0.0
      %1894 = vmatprep.subr.mxu0 0.0
      %1895 = vmatpush2.msra.mxu0 0.0
      %1896 = vmatprep.subr.mxu0 0.0
      %1897 = vmatpush2.msra.mxu0 0.0
      %1898 = vmatprep.subr.mxu0 0.0
      %1899 = vmatpush2.msra.mxu0 0.0
      %1900 = vmatprep.subr.mxu0 0.0
      %1901 = vmatpush2.msra.mxu0 0.0
      %1902 = vmatprep.subr.mxu0 0.0
      %1903 = vmatpush2.msra.mxu0 0.0
      %1904 = vmatprep.subr.mxu0 0.0
      %1905 = vmatpush2.msra.mxu0 0.0
      %1906 = vmatprep.subr.mxu0 0.0
      %1907 = vmatpush2.msra.mxu0 0.0
      %1908 = vmatprep.subr.mxu0 0.0
      %1909 = vmatpush2.msra.mxu0 0.0
      %1910 = vmatprep.subr.mxu0 0.0
      %1911 = vmatpush2.msra.mxu0 0.0
      %1912 = vmatprep.subr.mxu0 0.0
      %1913 = vmatpush2.msra.mxu0 0.0
      %1914 = vmatprep.subr.mxu0 0.0
      %1915 = vmatpush2.msra.mxu0 0.0
      %1916 = vmatprep.subr.mxu0 0.0
      %1917 = vmatpush2.msra.mxu0 0.0
      %1918 = vmatprep.mubr.f32.mxu0 0.0
      %v1919 = vand.u32 %v206, 4294901760
      %v1920 = vsub.f32 %v206, %v1919
      %1921 = vmatmul.mubr.f32.gmra.mxu0 %v1920
      %v1922 = vpop.f32.mrf.mxu0
      %v1923 = vadd.f32 %v1759, %v1922
      %v1924 = vpop.f32.mrf.mxu0
      %1925 = vmatprep.mubr.f32.mxu0 0.0
      %v1926 = vand.u32 %v209, 4294901760
      %v1927 = vsub.f32 %v209, %v1926
      %1928 = vmatmul.mubr.f32.gmra.mxu0 %v1927
      %v1929 = vpop.f32.mrf.mxu0
      %v1930 = vadd.f32 %v1765, %v1929
      %v1931 = vpop.f32.mrf.mxu0
      %1932 = vmatprep.mubr.f32.mxu0 0.0
      %v1933 = vand.u32 %v212, 4294901760
      %v1934 = vsub.f32 %v212, %v1933
      %1935 = vmatmul.mubr.f32.gmra.mxu0 %v1934
      %v1936 = vpop.f32.mrf.mxu0
      %v1937 = vadd.f32 %v1771, %v1936
      %v1938 = vpop.f32.mrf.mxu0
      %1939 = vmatprep.mubr.f32.mxu0 0.0
      %v1940 = vand.u32 %v215, 4294901760
      %v1941 = vsub.f32 %v215, %v1940
      %1942 = vmatmul.mubr.f32.gmra.mxu0 %v1941
      %v1943 = vpop.f32.mrf.mxu0
      %v1944 = vadd.f32 %v1777, %v1943
      %v1945 = vpop.f32.mrf.mxu0
      %1946 = vmatprep.mubr.f32.mxu0 0.0
      %v1947 = vand.u32 %v218, 4294901760
      %v1948 = vsub.f32 %v218, %v1947
      %1949 = vmatmul.mubr.f32.gmra.mxu0 %v1948
      %v1950 = vpop.f32.mrf.mxu0
      %v1951 = vadd.f32 %v1783, %v1950
      %v1952 = vpop.f32.mrf.mxu0
      %1953 = vmatprep.mubr.f32.mxu0 0.0
      %v1954 = vand.u32 %v221, 4294901760
      %v1955 = vsub.f32 %v221, %v1954
      %1956 = vmatmul.mubr.f32.gmra.mxu0 %v1955
      %v1957 = vpop.f32.mrf.mxu0
      %v1958 = vadd.f32 %v1789, %v1957
      %v1959 = vpop.f32.mrf.mxu0
      %1960 = vmatprep.mubr.f32.mxu0 0.0
      %v1961 = vand.u32 %v224, 4294901760
      %v1962 = vsub.f32 %v224, %v1961
      %1963 = vmatmul.mubr.f32.gmra.mxu0 %v1962
      %v1964 = vpop.f32.mrf.mxu0
      %v1965 = vadd.f32 %v1795, %v1964
      %v1966 = vpop.f32.mrf.mxu0
      %1967 = vmatprep.mubr.f32.mxu0 0.0
      %v1968 = vand.u32 %v227, 4294901760
      %v1969 = vsub.f32 %v227, %v1968
      %1970 = vmatmul.mubr.f32.gmra.mxu0 %v1969
      %v1971 = vpop.f32.mrf.mxu0
      %v1972 = vadd.f32 %v1801, %v1971
      %v1973 = vpop.f32.mrf.mxu0
      %1974 = vmatprep.mubr.f32.mxu0 0.0
      %v1975 = vand.u32 %v230, 4294901760
      %v1976 = vsub.f32 %v230, %v1975
      %1977 = vmatmul.mubr.f32.gmra.mxu0 %v1976
      %v1978 = vpop.f32.mrf.mxu0
      %v1979 = vadd.f32 %v1807, %v1978
      %v1980 = vpop.f32.mrf.mxu0
      %1981 = vmatprep.mubr.f32.mxu0 0.0
      %v1982 = vand.u32 %v233, 4294901760
      %v1983 = vsub.f32 %v233, %v1982
      %1984 = vmatmul.mubr.f32.gmra.mxu0 %v1983
      %v1985 = vpop.f32.mrf.mxu0
      %v1986 = vadd.f32 %v1813, %v1985
      %v1987 = vpop.f32.mrf.mxu0
      %1988 = vmatprep.mubr.f32.mxu0 0.0
      %v1989 = vand.u32 %v236, 4294901760
      %v1990 = vsub.f32 %v236, %v1989
      %1991 = vmatmul.mubr.f32.gmra.mxu0 %v1990
      %v1992 = vpop.f32.mrf.mxu0
      %v1993 = vadd.f32 %v1819, %v1992
      %v1994 = vpop.f32.mrf.mxu0
      %1995 = vmatprep.mubr.f32.mxu0 0.0
      %v1996 = vand.u32 %v239, 4294901760
      %v1997 = vsub.f32 %v239, %v1996
      %1998 = vmatmul.mubr.f32.gmra.mxu0 %v1997
      %v1999 = vpop.f32.mrf.mxu0
      %v2000 = vadd.f32 %v1825, %v1999
      %v2001 = vpop.f32.mrf.mxu0
      %2002 = vmatprep.mubr.f32.mxu0 0.0
      %v2003 = vand.u32 %v242, 4294901760
      %v2004 = vsub.f32 %v242, %v2003
      %2005 = vmatmul.mubr.f32.gmra.mxu0 %v2004
      %v2006 = vpop.f32.mrf.mxu0
      %v2007 = vadd.f32 %v1831, %v2006
      %v2008 = vpop.f32.mrf.mxu0
      %2009 = vmatprep.mubr.f32.mxu0 0.0
      %v2010 = vand.u32 %v245, 4294901760
      %v2011 = vsub.f32 %v245, %v2010
      %2012 = vmatmul.mubr.f32.gmra.mxu0 %v2011
      %v2013 = vpop.f32.mrf.mxu0
      %v2014 = vadd.f32 %v1837, %v2013
      %v2015 = vpop.f32.mrf.mxu0
      %2016 = vmatprep.mubr.f32.mxu0 0.0
      %v2017 = vand.u32 %v248, 4294901760
      %v2018 = vsub.f32 %v248, %v2017
      %2019 = vmatmul.mubr.f32.gmra.mxu0 %v2018
      %v2020 = vpop.f32.mrf.mxu0
      %v2021 = vadd.f32 %v1843, %v2020
      %v2022 = vpop.f32.mrf.mxu0
      %2023 = vmatprep.mubr.f32.mxu0 0.0
      %v2024 = vand.u32 %v251, 4294901760
      %v2025 = vsub.f32 %v251, %v2024
      %2026 = vmatmul.mubr.f32.gmra.mxu0 %v2025
      %v2027 = vpop.f32.mrf.mxu0
      %v2028 = vadd.f32 %v1849, %v2027
      %v2029 = vpop.f32.mrf.mxu0
      %2030 = vdwg.mxu0
      %2031 = vmatprep.subr.mxu0 0.0
      %2032 = vmatpush1.msra.mxu0 0.0
      %2033 = vmatprep.subr.mxu0 0.0
      %2034 = vmatpush1.msra.mxu0 0.0
      %2035 = vmatprep.subr.mxu0 0.0
      %2036 = vmatpush1.msra.mxu0 0.0
      %2037 = vmatprep.subr.mxu0 0.0
      %2038 = vmatpush1.msra.mxu0 0.0
      %2039 = vmatprep.subr.mxu0 0.0
      %2040 = vmatpush1.msra.mxu0 0.0
      %2041 = vmatprep.subr.mxu0 0.0
      %2042 = vmatpush1.msra.mxu0 0.0
      %2043 = vmatprep.subr.mxu0 0.0
      %2044 = vmatpush1.msra.mxu0 0.0
      %2045 = vmatprep.subr.mxu0 0.0
      %2046 = vmatpush1.msra.mxu0 0.0
      %2047 = vmatprep.subr.mxu0 0.0
      %2048 = vmatpush1.msra.mxu0 0.0
      %2049 = vmatprep.subr.mxu0 0.0
      %2050 = vmatpush1.msra.mxu0 0.0
      %2051 = vmatprep.subr.mxu0 0.0
      %2052 = vmatpush1.msra.mxu0 0.0
      %2053 = vmatprep.subr.mxu0 0.0
      %2054 = vmatpush1.msra.mxu0 0.0
      %2055 = vmatprep.subr.mxu0 0.0
      %2056 = vmatpush1.msra.mxu0 0.0
      %2057 = vmatprep.subr.mxu0 0.0
      %2058 = vmatpush1.msra.mxu0 0.0
      %2059 = vmatprep.subr.mxu0 0.0
      %2060 = vmatpush1.msra.mxu0 0.0
      %2061 = vmatprep.subr.mxu0 0.0
      %v2062 = vand.u32 %v258, 4294901760
      %2063 = vmatpush1.msra.mxu0 %v2062
      %2064 = vmatprep.subr.mxu0 0.0
      %2065 = vmatpush2.msra.mxu0 0.0
      %2066 = vmatprep.subr.mxu0 0.0
      %2067 = vmatpush2.msra.mxu0 0.0
      %2068 = vmatprep.subr.mxu0 0.0
      %2069 = vmatpush2.msra.mxu0 0.0
      %2070 = vmatprep.subr.mxu0 0.0
      %2071 = vmatpush2.msra.mxu0 0.0
      %2072 = vmatprep.subr.mxu0 0.0
      %2073 = vmatpush2.msra.mxu0 0.0
      %2074 = vmatprep.subr.mxu0 0.0
      %2075 = vmatpush2.msra.mxu0 0.0
      %2076 = vmatprep.subr.mxu0 0.0
      %2077 = vmatpush2.msra.mxu0 0.0
      %2078 = vmatprep.subr.mxu0 0.0
      %2079 = vmatpush2.msra.mxu0 0.0
      %2080 = vmatprep.subr.mxu0 0.0
      %2081 = vmatpush2.msra.mxu0 0.0
      %2082 = vmatprep.subr.mxu0 0.0
      %2083 = vmatpush2.msra.mxu0 0.0
      %2084 = vmatprep.subr.mxu0 0.0
      %2085 = vmatpush2.msra.mxu0 0.0
      %2086 = vmatprep.subr.mxu0 0.0
      %2087 = vmatpush2.msra.mxu0 0.0
      %2088 = vmatprep.subr.mxu0 0.0
      %2089 = vmatpush2.msra.mxu0 0.0
      %2090 = vmatprep.subr.mxu0 0.0
      %2091 = vmatpush2.msra.mxu0 0.0
      %2092 = vmatprep.subr.mxu0 0.0
      %2093 = vmatpush2.msra.mxu0 0.0
      %2094 = vmatprep.subr.mxu0 0.0
      %2095 = vmatpush2.msra.mxu0 0.0
      %2096 = vmatprep.mubr.f32.mxu0 0.0
      %v2097 = vand.u32 %v206, 4294901760
      %v2098 = vsub.f32 %v206, %v2097
      %v2099 = vand.u32 %v2098, 4294901760
      %2100 = vmatmul.mubr.f32.gmra.mxu0 %v2099
      %v2101 = vpop.f32.mrf.mxu0
      %v2102 = vadd.f32 %v1923, %v2101
      %v2103 = vpop.f32.mrf.mxu0
      %2104 = vmatprep.mubr.f32.mxu0 0.0
      %v2105 = vand.u32 %v209, 4294901760
      %v2106 = vsub.f32 %v209, %v2105
      %v2107 = vand.u32 %v2106, 4294901760
      %2108 = vmatmul.mubr.f32.gmra.mxu0 %v2107
      %v2109 = vpop.f32.mrf.mxu0
      %v2110 = vadd.f32 %v1930, %v2109
      %v2111 = vpop.f32.mrf.mxu0
      %2112 = vmatprep.mubr.f32.mxu0 0.0
      %v2113 = vand.u32 %v212, 4294901760
      %v2114 = vsub.f32 %v212, %v2113
      %v2115 = vand.u32 %v2114, 4294901760
      %2116 = vmatmul.mubr.f32.gmra.mxu0 %v2115
      %v2117 = vpop.f32.mrf.mxu0
      %v2118 = vadd.f32 %v1937, %v2117
      %v2119 = vpop.f32.mrf.mxu0
      %2120 = vmatprep.mubr.f32.mxu0 0.0
      %v2121 = vand.u32 %v215, 4294901760
      %v2122 = vsub.f32 %v215, %v2121
      %v2123 = vand.u32 %v2122, 4294901760
      %2124 = vmatmul.mubr.f32.gmra.mxu0 %v2123
      %v2125 = vpop.f32.mrf.mxu0
      %v2126 = vadd.f32 %v1944, %v2125
      %v2127 = vpop.f32.mrf.mxu0
      %2128 = vmatprep.mubr.f32.mxu0 0.0
      %v2129 = vand.u32 %v218, 4294901760
      %v2130 = vsub.f32 %v218, %v2129
      %v2131 = vand.u32 %v2130, 4294901760
      %2132 = vmatmul.mubr.f32.gmra.mxu0 %v2131
      %v2133 = vpop.f32.mrf.mxu0
      %v2134 = vadd.f32 %v1951, %v2133
      %v2135 = vpop.f32.mrf.mxu0
      %2136 = vmatprep.mubr.f32.mxu0 0.0
      %v2137 = vand.u32 %v221, 4294901760
      %v2138 = vsub.f32 %v221, %v2137
      %v2139 = vand.u32 %v2138, 4294901760
      %2140 = vmatmul.mubr.f32.gmra.mxu0 %v2139
      %v2141 = vpop.f32.mrf.mxu0
      %v2142 = vadd.f32 %v1958, %v2141
      %v2143 = vpop.f32.mrf.mxu0
      %2144 = vmatprep.mubr.f32.mxu0 0.0
      %v2145 = vand.u32 %v224, 4294901760
      %v2146 = vsub.f32 %v224, %v2145
      %v2147 = vand.u32 %v2146, 4294901760
      %2148 = vmatmul.mubr.f32.gmra.mxu0 %v2147
      %v2149 = vpop.f32.mrf.mxu0
      %v2150 = vadd.f32 %v1965, %v2149
      %v2151 = vpop.f32.mrf.mxu0
      %2152 = vmatprep.mubr.f32.mxu0 0.0
      %v2153 = vand.u32 %v227, 4294901760
      %v2154 = vsub.f32 %v227, %v2153
      %v2155 = vand.u32 %v2154, 4294901760
      %2156 = vmatmul.mubr.f32.gmra.mxu0 %v2155
      %v2157 = vpop.f32.mrf.mxu0
      %v2158 = vadd.f32 %v1972, %v2157
      %v2159 = vpop.f32.mrf.mxu0
      %2160 = vmatprep.mubr.f32.mxu0 0.0
      %v2161 = vand.u32 %v230, 4294901760
      %v2162 = vsub.f32 %v230, %v2161
      %v2163 = vand.u32 %v2162, 4294901760
      %2164 = vmatmul.mubr.f32.gmra.mxu0 %v2163
      %v2165 = vpop.f32.mrf.mxu0
      %v2166 = vadd.f32 %v1979, %v2165
      %v2167 = vpop.f32.mrf.mxu0
      %2168 = vmatprep.mubr.f32.mxu0 0.0
      %v2169 = vand.u32 %v233, 4294901760
      %v2170 = vsub.f32 %v233, %v2169
      %v2171 = vand.u32 %v2170, 4294901760
      %2172 = vmatmul.mubr.f32.gmra.mxu0 %v2171
      %v2173 = vpop.f32.mrf.mxu0
      %v2174 = vadd.f32 %v1986, %v2173
      %v2175 = vpop.f32.mrf.mxu0
      %2176 = vmatprep.mubr.f32.mxu0 0.0
      %v2177 = vand.u32 %v236, 4294901760
      %v2178 = vsub.f32 %v236, %v2177
      %v2179 = vand.u32 %v2178, 4294901760
      %2180 = vmatmul.mubr.f32.gmra.mxu0 %v2179
      %v2181 = vpop.f32.mrf.mxu0
      %v2182 = vadd.f32 %v1993, %v2181
      %v2183 = vpop.f32.mrf.mxu0
      %2184 = vmatprep.mubr.f32.mxu0 0.0
      %v2185 = vand.u32 %v239, 4294901760
      %v2186 = vsub.f32 %v239, %v2185
      %v2187 = vand.u32 %v2186, 4294901760
      %2188 = vmatmul.mubr.f32.gmra.mxu0 %v2187
      %v2189 = vpop.f32.mrf.mxu0
      %v2190 = vadd.f32 %v2000, %v2189
      %v2191 = vpop.f32.mrf.mxu0
      %2192 = vmatprep.mubr.f32.mxu0 0.0
      %v2193 = vand.u32 %v242, 4294901760
      %v2194 = vsub.f32 %v242, %v2193
      %v2195 = vand.u32 %v2194, 4294901760
      %2196 = vmatmul.mubr.f32.gmra.mxu0 %v2195
      %v2197 = vpop.f32.mrf.mxu0
      %v2198 = vadd.f32 %v2007, %v2197
      %v2199 = vpop.f32.mrf.mxu0
      %2200 = vmatprep.mubr.f32.mxu0 0.0
      %v2201 = vand.u32 %v245, 4294901760
      %v2202 = vsub.f32 %v245, %v2201
      %v2203 = vand.u32 %v2202, 4294901760
      %2204 = vmatmul.mubr.f32.gmra.mxu0 %v2203
      %v2205 = vpop.f32.mrf.mxu0
      %v2206 = vadd.f32 %v2014, %v2205
      %v2207 = vpop.f32.mrf.mxu0
      %2208 = vmatprep.mubr.f32.mxu0 0.0
      %v2209 = vand.u32 %v248, 4294901760
      %v2210 = vsub.f32 %v248, %v2209
      %v2211 = vand.u32 %v2210, 4294901760
      %2212 = vmatmul.mubr.f32.gmra.mxu0 %v2211
      %v2213 = vpop.f32.mrf.mxu0
      %v2214 = vadd.f32 %v2021, %v2213
      %v2215 = vpop.f32.mrf.mxu0
      %2216 = vmatprep.mubr.f32.mxu0 0.0
      %v2217 = vand.u32 %v251, 4294901760
      %v2218 = vsub.f32 %v251, %v2217
      %v2219 = vand.u32 %v2218, 4294901760
      %2220 = vmatmul.mubr.f32.gmra.mxu0 %v2219
      %v2221 = vpop.f32.mrf.mxu0
      %v2222 = vadd.f32 %v2028, %v2221
      %v2223 = vpop.f32.mrf.mxu0
      %2224 = vdwg.mxu0
      %2225 = vmatprep.subr.mxu0 0.0
      %2226 = vmatpush1.msra.mxu0 0.0
      %2227 = vmatprep.subr.mxu0 0.0
      %2228 = vmatpush1.msra.mxu0 0.0
      %2229 = vmatprep.subr.mxu0 0.0
      %2230 = vmatpush1.msra.mxu0 0.0
      %2231 = vmatprep.subr.mxu0 0.0
      %2232 = vmatpush1.msra.mxu0 0.0
      %2233 = vmatprep.subr.mxu0 0.0
      %2234 = vmatpush1.msra.mxu0 0.0
      %2235 = vmatprep.subr.mxu0 0.0
      %2236 = vmatpush1.msra.mxu0 0.0
      %2237 = vmatprep.subr.mxu0 0.0
      %2238 = vmatpush1.msra.mxu0 0.0
      %2239 = vmatprep.subr.mxu0 0.0
      %2240 = vmatpush1.msra.mxu0 0.0
      %2241 = vmatprep.subr.mxu0 0.0
      %2242 = vmatpush1.msra.mxu0 0.0
      %2243 = vmatprep.subr.mxu0 0.0
      %2244 = vmatpush1.msra.mxu0 0.0
      %2245 = vmatprep.subr.mxu0 0.0
      %2246 = vmatpush1.msra.mxu0 0.0
      %2247 = vmatprep.subr.mxu0 0.0
      %2248 = vmatpush1.msra.mxu0 0.0
      %2249 = vmatprep.subr.mxu0 0.0
      %2250 = vmatpush1.msra.mxu0 0.0
      %2251 = vmatprep.subr.mxu0 0.0
      %2252 = vmatpush1.msra.mxu0 0.0
      %2253 = vmatprep.subr.mxu0 0.0
      %2254 = vmatpush1.msra.mxu0 0.0
      %2255 = vmatprep.subr.mxu0 0.0
      %v2256 = vand.u32 %v258, 4294901760
      %v2257 = vsub.f32 %v258, %v2256
      %v2258 = vand.u32 %v2257, 4294901760
      %2259 = vmatpush1.msra.mxu0 %v2258
      %2260 = vmatprep.subr.mxu0 0.0
      %2261 = vmatpush2.msra.mxu0 0.0
      %2262 = vmatprep.subr.mxu0 0.0
      %2263 = vmatpush2.msra.mxu0 0.0
      %2264 = vmatprep.subr.mxu0 0.0
      %2265 = vmatpush2.msra.mxu0 0.0
      %2266 = vmatprep.subr.mxu0 0.0
      %2267 = vmatpush2.msra.mxu0 0.0
      %2268 = vmatprep.subr.mxu0 0.0
      %2269 = vmatpush2.msra.mxu0 0.0
      %2270 = vmatprep.subr.mxu0 0.0
      %2271 = vmatpush2.msra.mxu0 0.0
      %2272 = vmatprep.subr.mxu0 0.0
      %2273 = vmatpush2.msra.mxu0 0.0
      %2274 = vmatprep.subr.mxu0 0.0
      %2275 = vmatpush2.msra.mxu0 0.0
      %2276 = vmatprep.subr.mxu0 0.0
      %2277 = vmatpush2.msra.mxu0 0.0
      %2278 = vmatprep.subr.mxu0 0.0
      %2279 = vmatpush2.msra.mxu0 0.0
      %2280 = vmatprep.subr.mxu0 0.0
      %2281 = vmatpush2.msra.mxu0 0.0
      %2282 = vmatprep.subr.mxu0 0.0
      %2283 = vmatpush2.msra.mxu0 0.0
      %2284 = vmatprep.subr.mxu0 0.0
      %2285 = vmatpush2.msra.mxu0 0.0
      %2286 = vmatprep.subr.mxu0 0.0
      %2287 = vmatpush2.msra.mxu0 0.0
      %2288 = vmatprep.subr.mxu0 0.0
      %2289 = vmatpush2.msra.mxu0 0.0
      %2290 = vmatprep.subr.mxu0 0.0
      %2291 = vmatpush2.msra.mxu0 0.0
      %2292 = vmatprep.mubr.f32.mxu0 0.0
      %v2293 = vand.u32 %v206, 4294901760
      %2294 = vmatmul.mubr.f32.gmra.mxu0 %v2293
      %v2295 = vpop.f32.mrf.mxu0
      %v2296 = vadd.f32 %v2102, %v2295
      %v2297 = vpop.f32.mrf.mxu0
      %2298 = vmatprep.mubr.f32.mxu0 0.0
      %v2299 = vand.u32 %v209, 4294901760
      %2300 = vmatmul.mubr.f32.gmra.mxu0 %v2299
      %v2301 = vpop.f32.mrf.mxu0
      %v2302 = vadd.f32 %v2110, %v2301
      %v2303 = vpop.f32.mrf.mxu0
      %2304 = vmatprep.mubr.f32.mxu0 0.0
      %v2305 = vand.u32 %v212, 4294901760
      %2306 = vmatmul.mubr.f32.gmra.mxu0 %v2305
      %v2307 = vpop.f32.mrf.mxu0
      %v2308 = vadd.f32 %v2118, %v2307
      %v2309 = vpop.f32.mrf.mxu0
      %2310 = vmatprep.mubr.f32.mxu0 0.0
      %v2311 = vand.u32 %v215, 4294901760
      %2312 = vmatmul.mubr.f32.gmra.mxu0 %v2311
      %v2313 = vpop.f32.mrf.mxu0
      %v2314 = vadd.f32 %v2126, %v2313
      %v2315 = vpop.f32.mrf.mxu0
      %2316 = vmatprep.mubr.f32.mxu0 0.0
      %v2317 = vand.u32 %v218, 4294901760
      %2318 = vmatmul.mubr.f32.gmra.mxu0 %v2317
      %v2319 = vpop.f32.mrf.mxu0
      %v2320 = vadd.f32 %v2134, %v2319
      %v2321 = vpop.f32.mrf.mxu0
      %2322 = vmatprep.mubr.f32.mxu0 0.0
      %v2323 = vand.u32 %v221, 4294901760
      %2324 = vmatmul.mubr.f32.gmra.mxu0 %v2323
      %v2325 = vpop.f32.mrf.mxu0
      %v2326 = vadd.f32 %v2142, %v2325
      %v2327 = vpop.f32.mrf.mxu0
      %2328 = vmatprep.mubr.f32.mxu0 0.0
      %v2329 = vand.u32 %v224, 4294901760
      %2330 = vmatmul.mubr.f32.gmra.mxu0 %v2329
      %v2331 = vpop.f32.mrf.mxu0
      %v2332 = vadd.f32 %v2150, %v2331
      %v2333 = vpop.f32.mrf.mxu0
      %2334 = vmatprep.mubr.f32.mxu0 0.0
      %v2335 = vand.u32 %v227, 4294901760
      %2336 = vmatmul.mubr.f32.gmra.mxu0 %v2335
      %v2337 = vpop.f32.mrf.mxu0
      %v2338 = vadd.f32 %v2158, %v2337
      %v2339 = vpop.f32.mrf.mxu0
      %2340 = vmatprep.mubr.f32.mxu0 0.0
      %v2341 = vand.u32 %v230, 4294901760
      %2342 = vmatmul.mubr.f32.gmra.mxu0 %v2341
      %v2343 = vpop.f32.mrf.mxu0
      %v2344 = vadd.f32 %v2166, %v2343
      %v2345 = vpop.f32.mrf.mxu0
      %2346 = vmatprep.mubr.f32.mxu0 0.0
      %v2347 = vand.u32 %v233, 4294901760
      %2348 = vmatmul.mubr.f32.gmra.mxu0 %v2347
      %v2349 = vpop.f32.mrf.mxu0
      %v2350 = vadd.f32 %v2174, %v2349
      %v2351 = vpop.f32.mrf.mxu0
      %2352 = vmatprep.mubr.f32.mxu0 0.0
      %v2353 = vand.u32 %v236, 4294901760
      %2354 = vmatmul.mubr.f32.gmra.mxu0 %v2353
      %v2355 = vpop.f32.mrf.mxu0
      %v2356 = vadd.f32 %v2182, %v2355
      %v2357 = vpop.f32.mrf.mxu0
      %2358 = vmatprep.mubr.f32.mxu0 0.0
      %v2359 = vand.u32 %v239, 4294901760
      %2360 = vmatmul.mubr.f32.gmra.mxu0 %v2359
      %v2361 = vpop.f32.mrf.mxu0
      %v2362 = vadd.f32 %v2190, %v2361
      %v2363 = vpop.f32.mrf.mxu0
      %2364 = vmatprep.mubr.f32.mxu0 0.0
      %v2365 = vand.u32 %v242, 4294901760
      %2366 = vmatmul.mubr.f32.gmra.mxu0 %v2365
      %v2367 = vpop.f32.mrf.mxu0
      %v2368 = vadd.f32 %v2198, %v2367
      %v2369 = vpop.f32.mrf.mxu0
      %2370 = vmatprep.mubr.f32.mxu0 0.0
      %v2371 = vand.u32 %v245, 4294901760
      %2372 = vmatmul.mubr.f32.gmra.mxu0 %v2371
      %v2373 = vpop.f32.mrf.mxu0
      %v2374 = vadd.f32 %v2206, %v2373
      %v2375 = vpop.f32.mrf.mxu0
      %2376 = vmatprep.mubr.f32.mxu0 0.0
      %v2377 = vand.u32 %v248, 4294901760
      %2378 = vmatmul.mubr.f32.gmra.mxu0 %v2377
      %v2379 = vpop.f32.mrf.mxu0
      %v2380 = vadd.f32 %v2214, %v2379
      %v2381 = vpop.f32.mrf.mxu0
      %2382 = vmatprep.mubr.f32.mxu0 0.0
      %v2383 = vand.u32 %v251, 4294901760
      %2384 = vmatmul.mubr.f32.gmra.mxu0 %v2383
      %v2385 = vpop.f32.mrf.mxu0
      %v2386 = vadd.f32 %v2222, %v2385
      %v2387 = vpop.f32.mrf.mxu0
      %2388 = vdwg.mxu0
      %2389 = vmatprep.subr.mxu0 0.0
      %2390 = vmatpush1.msra.mxu0 0.0
      %2391 = vmatprep.subr.mxu0 0.0
      %2392 = vmatpush1.msra.mxu0 0.0
      %2393 = vmatprep.subr.mxu0 0.0
      %2394 = vmatpush1.msra.mxu0 0.0
      %2395 = vmatprep.subr.mxu0 0.0
      %2396 = vmatpush1.msra.mxu0 0.0
      %2397 = vmatprep.subr.mxu0 0.0
      %2398 = vmatpush1.msra.mxu0 0.0
      %2399 = vmatprep.subr.mxu0 0.0
      %2400 = vmatpush1.msra.mxu0 0.0
      %2401 = vmatprep.subr.mxu0 0.0
      %2402 = vmatpush1.msra.mxu0 0.0
      %2403 = vmatprep.subr.mxu0 0.0
      %2404 = vmatpush1.msra.mxu0 0.0
      %2405 = vmatprep.subr.mxu0 0.0
      %2406 = vmatpush1.msra.mxu0 0.0
      %2407 = vmatprep.subr.mxu0 0.0
      %2408 = vmatpush1.msra.mxu0 0.0
      %2409 = vmatprep.subr.mxu0 0.0
      %2410 = vmatpush1.msra.mxu0 0.0
      %2411 = vmatprep.subr.mxu0 0.0
      %2412 = vmatpush1.msra.mxu0 0.0
      %2413 = vmatprep.subr.mxu0 0.0
      %2414 = vmatpush1.msra.mxu0 0.0
      %2415 = vmatprep.subr.mxu0 0.0
      %2416 = vmatpush1.msra.mxu0 0.0
      %2417 = vmatprep.subr.mxu0 0.0
      %2418 = vmatpush1.msra.mxu0 0.0
      %2419 = vmatprep.subr.mxu0 0.0
      %v2420 = vand.u32 %v258, 4294901760
      %2421 = vmatpush1.msra.mxu0 %v2420
      %2422 = vmatprep.subr.mxu0 0.0
      %2423 = vmatpush2.msra.mxu0 0.0
      %2424 = vmatprep.subr.mxu0 0.0
      %2425 = vmatpush2.msra.mxu0 0.0
      %2426 = vmatprep.subr.mxu0 0.0
      %2427 = vmatpush2.msra.mxu0 0.0
      %2428 = vmatprep.subr.mxu0 0.0
      %2429 = vmatpush2.msra.mxu0 0.0
      %2430 = vmatprep.subr.mxu0 0.0
      %2431 = vmatpush2.msra.mxu0 0.0
      %2432 = vmatprep.subr.mxu0 0.0
      %2433 = vmatpush2.msra.mxu0 0.0
      %2434 = vmatprep.subr.mxu0 0.0
      %2435 = vmatpush2.msra.mxu0 0.0
      %2436 = vmatprep.subr.mxu0 0.0
      %2437 = vmatpush2.msra.mxu0 0.0
      %2438 = vmatprep.subr.mxu0 0.0
      %2439 = vmatpush2.msra.mxu0 0.0
      %2440 = vmatprep.subr.mxu0 0.0
      %2441 = vmatpush2.msra.mxu0 0.0
      %2442 = vmatprep.subr.mxu0 0.0
      %2443 = vmatpush2.msra.mxu0 0.0
      %2444 = vmatprep.subr.mxu0 0.0
      %2445 = vmatpush2.msra.mxu0 0.0
      %2446 = vmatprep.subr.mxu0 0.0
      %2447 = vmatpush2.msra.mxu0 0.0
      %2448 = vmatprep.subr.mxu0 0.0
      %2449 = vmatpush2.msra.mxu0 0.0
      %2450 = vmatprep.subr.mxu0 0.0
      %2451 = vmatpush2.msra.mxu0 0.0
      %2452 = vmatprep.subr.mxu0 0.0
      %2453 = vmatpush2.msra.mxu0 0.0
      %2454 = vmatprep.mubr.f32.mxu0 0.0
      %v2455 = vand.u32 %v206, 4294901760
      %2456 = vmatmul.mubr.f32.gmra.mxu0 %v2455
      %v2457 = vpop.f32.mrf.mxu0
      %v2458 = vadd.f32 %v2296, %v2457
      %v2459 = vpop.f32.mrf.mxu0
      %2460 = vmatprep.mubr.f32.mxu0 0.0
      %v2461 = vand.u32 %v209, 4294901760
      %2462 = vmatmul.mubr.f32.gmra.mxu0 %v2461
      %v2463 = vpop.f32.mrf.mxu0
      %v2464 = vadd.f32 %v2302, %v2463
      %v2465 = vpop.f32.mrf.mxu0
      %2466 = vmatprep.mubr.f32.mxu0 0.0
      %v2467 = vand.u32 %v212, 4294901760
      %2468 = vmatmul.mubr.f32.gmra.mxu0 %v2467
      %v2469 = vpop.f32.mrf.mxu0
      %v2470 = vadd.f32 %v2308, %v2469
      %v2471 = vpop.f32.mrf.mxu0
      %2472 = vmatprep.mubr.f32.mxu0 0.0
      %v2473 = vand.u32 %v215, 4294901760
      %2474 = vmatmul.mubr.f32.gmra.mxu0 %v2473
      %v2475 = vpop.f32.mrf.mxu0
      %v2476 = vadd.f32 %v2314, %v2475
      %v2477 = vpop.f32.mrf.mxu0
      %2478 = vmatprep.mubr.f32.mxu0 0.0
      %v2479 = vand.u32 %v218, 4294901760
      %2480 = vmatmul.mubr.f32.gmra.mxu0 %v2479
      %v2481 = vpop.f32.mrf.mxu0
      %v2482 = vadd.f32 %v2320, %v2481
      %v2483 = vpop.f32.mrf.mxu0
      %2484 = vmatprep.mubr.f32.mxu0 0.0
      %v2485 = vand.u32 %v221, 4294901760
      %2486 = vmatmul.mubr.f32.gmra.mxu0 %v2485
      %v2487 = vpop.f32.mrf.mxu0
      %v2488 = vadd.f32 %v2326, %v2487
      %v2489 = vpop.f32.mrf.mxu0
      %2490 = vmatprep.mubr.f32.mxu0 0.0
      %v2491 = vand.u32 %v224, 4294901760
      %2492 = vmatmul.mubr.f32.gmra.mxu0 %v2491
      %v2493 = vpop.f32.mrf.mxu0
      %v2494 = vadd.f32 %v2332, %v2493
      %v2495 = vpop.f32.mrf.mxu0
      %2496 = vmatprep.mubr.f32.mxu0 0.0
      %v2497 = vand.u32 %v227, 4294901760
      %2498 = vmatmul.mubr.f32.gmra.mxu0 %v2497
      %v2499 = vpop.f32.mrf.mxu0
      %v2500 = vadd.f32 %v2338, %v2499
      %v2501 = vpop.f32.mrf.mxu0
      %2502 = vmatprep.mubr.f32.mxu0 0.0
      %v2503 = vand.u32 %v230, 4294901760
      %2504 = vmatmul.mubr.f32.gmra.mxu0 %v2503
      %v2505 = vpop.f32.mrf.mxu0
      %v2506 = vadd.f32 %v2344, %v2505
      %v2507 = vpop.f32.mrf.mxu0
      %2508 = vmatprep.mubr.f32.mxu0 0.0
      %v2509 = vand.u32 %v233, 4294901760
      %2510 = vmatmul.mubr.f32.gmra.mxu0 %v2509
      %v2511 = vpop.f32.mrf.mxu0
      %v2512 = vadd.f32 %v2350, %v2511
      %v2513 = vpop.f32.mrf.mxu0
      %2514 = vmatprep.mubr.f32.mxu0 0.0
      %v2515 = vand.u32 %v236, 4294901760
      %2516 = vmatmul.mubr.f32.gmra.mxu0 %v2515
      %v2517 = vpop.f32.mrf.mxu0
      %v2518 = vadd.f32 %v2356, %v2517
      %v2519 = vpop.f32.mrf.mxu0
      %2520 = vmatprep.mubr.f32.mxu0 0.0
      %v2521 = vand.u32 %v239, 4294901760
      %2522 = vmatmul.mubr.f32.gmra.mxu0 %v2521
      %v2523 = vpop.f32.mrf.mxu0
      %v2524 = vadd.f32 %v2362, %v2523
      %v2525 = vpop.f32.mrf.mxu0
      %2526 = vmatprep.mubr.f32.mxu0 0.0
      %v2527 = vand.u32 %v242, 4294901760
      %2528 = vmatmul.mubr.f32.gmra.mxu0 %v2527
      %v2529 = vpop.f32.mrf.mxu0
      %v2530 = vadd.f32 %v2368, %v2529
      %v2531 = vpop.f32.mrf.mxu0
      %2532 = vmatprep.mubr.f32.mxu0 0.0
      %v2533 = vand.u32 %v245, 4294901760
      %2534 = vmatmul.mubr.f32.gmra.mxu0 %v2533
      %v2535 = vpop.f32.mrf.mxu0
      %v2536 = vadd.f32 %v2374, %v2535
      %v2537 = vpop.f32.mrf.mxu0
      %2538 = vmatprep.mubr.f32.mxu0 0.0
      %v2539 = vand.u32 %v248, 4294901760
      %2540 = vmatmul.mubr.f32.gmra.mxu0 %v2539
      %v2541 = vpop.f32.mrf.mxu0
      %v2542 = vadd.f32 %v2380, %v2541
      %v2543 = vpop.f32.mrf.mxu0
      %2544 = vmatprep.mubr.f32.mxu0 0.0
      %v2545 = vand.u32 %v251, 4294901760
      %2546 = vmatmul.mubr.f32.gmra.mxu0 %v2545
      %v2547 = vpop.f32.mrf.mxu0
      %v2548 = vadd.f32 %v2386, %v2547
      %v2549 = vpop.f32.mrf.mxu0
      %2550 = vdwg.mxu0
      %v2551 = vadd.f32 %v1351, 3.0
      %v2552 = vadd.f32 %v1353, 3.0
      %v2553 = vadd.f32 %v2458, 3.0
      %v2554 = vadd.f32 %v1358, 3.0
      %v2555 = vadd.f32 %v1360, 3.0
      %v2556 = vadd.f32 %v2464, 3.0
      %v2557 = vadd.f32 %v1365, 3.0
      %v2558 = vadd.f32 %v1367, 3.0
      %v2559 = vadd.f32 %v2470, 3.0
      %v2560 = vadd.f32 %v1372, 3.0
      %v2561 = vadd.f32 %v1374, 3.0
      %v2562 = vadd.f32 %v2476, 3.0
      %v2563 = vadd.f32 %v1379, 3.0
      %v2564 = vadd.f32 %v1381, 3.0
      %v2565 = vadd.f32 %v2482, 3.0
      %v2566 = vadd.f32 %v1386, 3.0
      %v2567 = vadd.f32 %v1388, 3.0
      %v2568 = vadd.f32 %v2488, 3.0
      %v2569 = vadd.f32 %v1393, 3.0
      %v2570 = vadd.f32 %v1395, 3.0
      %v2571 = vadd.f32 %v2494, 3.0
      %v2572 = vadd.f32 %v1400, 3.0
      %v2573 = vadd.f32 %v1402, 3.0
      %v2574 = vadd.f32 %v2500, 3.0
      %v2575 = vadd.f32 %v1407, 3.0
      %v2576 = vadd.f32 %v1409, 3.0
      %v2577 = vadd.f32 %v2506, 3.0
      %v2578 = vadd.f32 %v1414, 3.0
      %v2579 = vadd.f32 %v1416, 3.0
      %v2580 = vadd.f32 %v2512, 3.0
      %v2581 = vadd.f32 %v1421, 3.0
      %v2582 = vadd.f32 %v1423, 3.0
      %v2583 = vadd.f32 %v2518, 3.0
      %v2584 = vadd.f32 %v1428, 3.0
      %v2585 = vadd.f32 %v1430, 3.0
      %v2586 = vadd.f32 %v2524, 3.0
      %v2587 = vadd.f32 %v1435, 3.0
      %v2588 = vadd.f32 %v1437, 3.0
      %v2589 = vadd.f32 %v2530, 3.0
      %v2590 = vadd.f32 %v1442, 3.0
      %v2591 = vadd.f32 %v1444, 3.0
      %v2592 = vadd.f32 %v2536, 3.0
      %v2593 = vadd.f32 %v1449, 3.0
      %v2594 = vadd.f32 %v1451, 3.0
      %v2595 = vadd.f32 %v2542, 3.0
      %v2596 = vadd.f32 %v1456, 3.0
      %v2597 = vadd.f32 %v1458, 3.0
      %v2598 = vadd.f32 %v2548, 3.0
      %v2599 = vmax.f32 %v2551, 0.0
      %v2600 = vmax.f32 %v2552, 0.0
      %v2601 = vmax.f32 %v2553, 0.0
      %v2602 = vmax.f32 %v2554, 0.0
      %v2603 = vmax.f32 %v2555, 0.0
      %v2604 = vmax.f32 %v2556, 0.0
      %v2605 = vmax.f32 %v2557, 0.0
      %v2606 = vmax.f32 %v2558, 0.0
      %v2607 = vmax.f32 %v2559, 0.0
      %v2608 = vmax.f32 %v2560, 0.0
      %v2609 = vmax.f32 %v2561, 0.0
      %v2610 = vmax.f32 %v2562, 0.0
      %v2611 = vmax.f32 %v2563, 0.0
      %v2612 = vmax.f32 %v2564, 0.0
      %v2613 = vmax.f32 %v2565, 0.0
      %v2614 = vmax.f32 %v2566, 0.0
      %v2615 = vmax.f32 %v2567, 0.0
      %v2616 = vmax.f32 %v2568, 0.0
      %v2617 = vmax.f32 %v2569, 0.0
      %v2618 = vmax.f32 %v2570, 0.0
      %v2619 = vmax.f32 %v2571, 0.0
      %v2620 = vmax.f32 %v2572, 0.0
      %v2621 = vmax.f32 %v2573, 0.0
      %v2622 = vmax.f32 %v2574, 0.0
      %v2623 = vmax.f32 %v2575, 0.0
      %v2624 = vmax.f32 %v2576, 0.0
      %v2625 = vmax.f32 %v2577, 0.0
      %v2626 = vmax.f32 %v2578, 0.0
      %v2627 = vmax.f32 %v2579, 0.0
      %v2628 = vmax.f32 %v2580, 0.0
      %v2629 = vmax.f32 %v2581, 0.0
      %v2630 = vmax.f32 %v2582, 0.0
      %v2631 = vmax.f32 %v2583, 0.0
      %v2632 = vmax.f32 %v2584, 0.0
      %v2633 = vmax.f32 %v2585, 0.0
      %v2634 = vmax.f32 %v2586, 0.0
      %v2635 = vmax.f32 %v2587, 0.0
      %v2636 = vmax.f32 %v2588, 0.0
      %v2637 = vmax.f32 %v2589, 0.0
      %v2638 = vmax.f32 %v2590, 0.0
      %v2639 = vmax.f32 %v2591, 0.0
      %v2640 = vmax.f32 %v2592, 0.0
      %v2641 = vmax.f32 %v2593, 0.0
      %v2642 = vmax.f32 %v2594, 0.0
      %v2643 = vmax.f32 %v2595, 0.0
      %v2644 = vmax.f32 %v2596, 0.0
      %v2645 = vmax.f32 %v2597, 0.0
      %v2646 = vmax.f32 %v2598, 0.0
      %v2647 = vmul.f32 %v1351, %v2599
      %v2648 = vmul.f32 %v1353, %v2600
      %v2649 = vmul.f32 %v2458, %v2601
      %v2650 = vmul.f32 %v1358, %v2602
      %v2651 = vmul.f32 %v1360, %v2603
      %v2652 = vmul.f32 %v2464, %v2604
      %v2653 = vmul.f32 %v1365, %v2605
      %v2654 = vmul.f32 %v1367, %v2606
      %v2655 = vmul.f32 %v2470, %v2607
      %v2656 = vmul.f32 %v1372, %v2608
      %v2657 = vmul.f32 %v1374, %v2609
      %v2658 = vmul.f32 %v2476, %v2610
      %v2659 = vmul.f32 %v1379, %v2611
      %v2660 = vmul.f32 %v1381, %v2612
      %v2661 = vmul.f32 %v2482, %v2613
      %v2662 = vmul.f32 %v1386, %v2614
      %v2663 = vmul.f32 %v1388, %v2615
      %v2664 = vmul.f32 %v2488, %v2616
      %v2665 = vmul.f32 %v1393, %v2617
      %v2666 = vmul.f32 %v1395, %v2618
      %v2667 = vmul.f32 %v2494, %v2619
      %v2668 = vmul.f32 %v1400, %v2620
      %v2669 = vmul.f32 %v1402, %v2621
      %v2670 = vmul.f32 %v2500, %v2622
      %v2671 = vmul.f32 %v1407, %v2623
      %v2672 = vmul.f32 %v1409, %v2624
      %v2673 = vmul.f32 %v2506, %v2625
      %v2674 = vmul.f32 %v1414, %v2626
      %v2675 = vmul.f32 %v1416, %v2627
      %v2676 = vmul.f32 %v2512, %v2628
      %v2677 = vmul.f32 %v1421, %v2629
      %v2678 = vmul.f32 %v1423, %v2630
      %v2679 = vmul.f32 %v2518, %v2631
      %v2680 = vmul.f32 %v1428, %v2632
      %v2681 = vmul.f32 %v1430, %v2633
      %v2682 = vmul.f32 %v2524, %v2634
      %v2683 = vmul.f32 %v1435, %v2635
      %v2684 = vmul.f32 %v1437, %v2636
      %v2685 = vmul.f32 %v2530, %v2637
      %v2686 = vmul.f32 %v1442, %v2638
      %v2687 = vmul.f32 %v1444, %v2639
      %v2688 = vmul.f32 %v2536, %v2640
      %v2689 = vmul.f32 %v1449, %v2641
      %v2690 = vmul.f32 %v1451, %v2642
      %v2691 = vmul.f32 %v2542, %v2643
      %v2692 = vmul.f32 %v1456, %v2644
      %v2693 = vmul.f32 %v1458, %v2645
      %v2694 = vmul.f32 %v2548, %v2646
      %v2695 = vmul.f32 %v2647, 0.16666667
      %v2696 = vmul.f32 %v2648, 0.16666667
      %v2697 = vmul.f32 %v2649, 0.16666667
      %v2698 = vmul.f32 %v2650, 0.16666667
      %v2699 = vmul.f32 %v2651, 0.16666667
      %v2700 = vmul.f32 %v2652, 0.16666667
      %v2701 = vmul.f32 %v2653, 0.16666667
      %v2702 = vmul.f32 %v2654, 0.16666667
      %v2703 = vmul.f32 %v2655, 0.16666667
      %v2704 = vmul.f32 %v2656, 0.16666667
      %v2705 = vmul.f32 %v2657, 0.16666667
      %v2706 = vmul.f32 %v2658, 0.16666667
      %v2707 = vmul.f32 %v2659, 0.16666667
      %v2708 = vmul.f32 %v2660, 0.16666667
      %v2709 = vmul.f32 %v2661, 0.16666667
      %v2710 = vmul.f32 %v2662, 0.16666667
      %v2711 = vmul.f32 %v2663, 0.16666667
      %v2712 = vmul.f32 %v2664, 0.16666667
      %v2713 = vmul.f32 %v2665, 0.16666667
      %v2714 = vmul.f32 %v2666, 0.16666667
      %v2715 = vmul.f32 %v2667, 0.16666667
      %v2716 = vmul.f32 %v2668, 0.16666667
      %v2717 = vmul.f32 %v2669, 0.16666667
      %v2718 = vmul.f32 %v2670, 0.16666667
      %v2719 = vmul.f32 %v2671, 0.16666667
      %v2720 = vmul.f32 %v2672, 0.16666667
      %v2721 = vmul.f32 %v2673, 0.16666667
      %v2722 = vmul.f32 %v2674, 0.16666667
      %v2723 = vmul.f32 %v2675, 0.16666667
      %v2724 = vmul.f32 %v2676, 0.16666667
      %v2725 = vmul.f32 %v2677, 0.16666667
      %v2726 = vmul.f32 %v2678, 0.16666667
      %v2727 = vmul.f32 %v2679, 0.16666667
      %v2728 = vmul.f32 %v2680, 0.16666667
      %v2729 = vmul.f32 %v2681, 0.16666667
      %v2730 = vmul.f32 %v2682, 0.16666667
      %v2731 = vmul.f32 %v2683, 0.16666667
      %v2732 = vmul.f32 %v2684, 0.16666667
      %v2733 = vmul.f32 %v2685, 0.16666667
      %v2734 = vmul.f32 %v2686, 0.16666667
      %v2735 = vmul.f32 %v2687, 0.16666667
      %v2736 = vmul.f32 %v2688, 0.16666667
      %v2737 = vmul.f32 %v2689, 0.16666667
      %v2738 = vmul.f32 %v2690, 0.16666667
      %v2739 = vmul.f32 %v2691, 0.16666667
      %v2740 = vmul.f32 %v2692, 0.16666667
      %v2741 = vmul.f32 %v2693, 0.16666667
      %v2742 = vmul.f32 %v2694, 0.16666667
      %2743 = vst [vmem:[%s181] sm:$0xff] %v2695
      %2744 = vst [vmem:[%s181 + $0x8] sm:$0xff] %v2696
      %2745 = vst [vmem:[%s181 + $0x10] sm:$0xff] %v2697
      %2746 = vst [vmem:[%s181 + $0x18] sm:$0xff] %v2698
      %2747 = vst [vmem:[%s181 + $0x20] sm:$0xff] %v2699
      %2748 = vst [vmem:[%s181 + $0x28] sm:$0xff] %v2700
      %2749 = vst [vmem:[%s181 + $0x30] sm:$0xff] %v2701
      %2750 = vst [vmem:[%s181 + $0x38] sm:$0xff] %v2702
      %2751 = vst [vmem:[%s181 + $0x40] sm:$0xff] %v2703
      %2752 = vst [vmem:[%s181 + $0x48] sm:$0xff] %v2704
      %2753 = vst [vmem:[%s181 + $0x50] sm:$0xff] %v2705
      %2754 = vst [vmem:[%s181 + $0x58] sm:$0xff] %v2706
      %2755 = vst [vmem:[%s181 + $0x60] sm:$0xff] %v2707
      %2756 = vst [vmem:[%s181 + $0x68] sm:$0xff] %v2708
      %2757 = vst [vmem:[%s181 + $0x70] sm:$0xff] %v2709
      %2758 = vst [vmem:[%s181 + $0x78] sm:$0xff] %v2710
      %2759 = vst [vmem:[%s181 + $0x80] sm:$0xff] %v2711
      %2760 = vst [vmem:[%s181 + $0x88] sm:$0xff] %v2712
      %2761 = vst [vmem:[%s181 + $0x90] sm:$0xff] %v2713
      %2762 = vst [vmem:[%s181 + $0x98] sm:$0xff] %v2714
      %2763 = vst [vmem:[%s181 + $0xa0] sm:$0xff] %v2715
      %2764 = vst [vmem:[%s181 + $0xa8] sm:$0xff] %v2716
      %2765 = vst [vmem:[%s181 + $0xb0] sm:$0xff] %v2717
      %2766 = vst [vmem:[%s181 + $0xb8] sm:$0xff] %v2718
      %2767 = vst [vmem:[%s181 + $0xc0] sm:$0xff] %v2719
      %2768 = vst [vmem:[%s181 + $0xc8] sm:$0xff] %v2720
      %2769 = vst [vmem:[%s181 + $0xd0] sm:$0xff] %v2721
      %2770 = vst [vmem:[%s181 + $0xd8] sm:$0xff] %v2722
      %2771 = vst [vmem:[%s181 + $0xe0] sm:$0xff] %v2723
      %2772 = vst [vmem:[%s181 + $0xe8] sm:$0xff] %v2724
      %2773 = vst [vmem:[%s181 + $0xf0] sm:$0xff] %v2725
      %2774 = vst [vmem:[%s181 + $0xf8] sm:$0xff] %v2726
      %2775 = vst [vmem:[%s181 + $0x100] sm:$0xff] %v2727
      %2776 = vst [vmem:[%s181 + $0x108] sm:$0xff] %v2728
      %2777 = vst [vmem:[%s181 + $0x110] sm:$0xff] %v2729
      %2778 = vst [vmem:[%s181 + $0x118] sm:$0xff] %v2730
      %2779 = vst [vmem:[%s181 + $0x120] sm:$0xff] %v2731
      %2780 = vst [vmem:[%s181 + $0x128] sm:$0xff] %v2732
      %2781 = vst [vmem:[%s181 + $0x130] sm:$0xff] %v2733
      %2782 = vst [vmem:[%s181 + $0x138] sm:$0xff] %v2734
      %2783 = vst [vmem:[%s181 + $0x140] sm:$0xff] %v2735
      %2784 = vst [vmem:[%s181 + $0x148] sm:$0xff] %v2736
      %2785 = vst [vmem:[%s181 + $0x150] sm:$0xff] %v2737
      %2786 = vst [vmem:[%s181 + $0x158] sm:$0xff] %v2738
      %2787 = vst [vmem:[%s181 + $0x160] sm:$0xff] %v2739
      %2788 = vst [vmem:[%s181 + $0x168] sm:$0xff] %v2740
      %2789 = vst [vmem:[%s181 + $0x170] sm:$0xff] %v2741
      %2790 = vst [vmem:[%s181 + $0x178] sm:$0xff] %v2742
      %s2791 = smul.u32 3, %s18
      %p2792 = scmp.lt.s32.totalorder %s17, 1
      %s2793 = scalar_select %p2792, %s17, 1
      %p2794 = scmp.lt.s32.totalorder %s2791, 2
      %s2795 = scalar_select %p2794, %s2791, 2
      %s2796 = smul.addr %s2793, 48
      %s2797 = sadd.s32 %s2795, %s2796
      %s2798 = smul.addr %s2797, 8
      %s2799 = scalar_lea.vmem %s2, %s2798
      // Predicated region
      $region29: #{tpu_custom_call.1} parent=27 // pred_check
        %p2800 = pneg %p94
      $region30: #{tpu_custom_call.1} parent=27 // pred_check_branch
        %2802 = sbr.rel (%p2800) target = $region32
      $region31: #{tpu_custom_call.1} parent=27 // pred_region
        %s2803 = smul.u32 3, %s18
      $region32: #{tpu_custom_call.1} parent=27 // pred_fallthru
        _
    $region28: #{tpu_custom_call.1} parent=5 // pred_fallthru
      _
    %p2804 = scmp.le.s32.totalorder 2, %s8
    // Predicated region
    $region33: #{tpu_custom_call.1} parent=5 // pred_check
      %p2805 = pneg %p2804
    $region34: #{tpu_custom_call.1} parent=5 // pred_check_branch
      %2807 = sbr.rel (%p2805) target = $region36
    $region35: #{tpu_custom_call.1} parent=5 // pred_region
      %s2808 = ssub.s32 %s8, 2
      // Predicated region
      $region37: #{tpu_custom_call.1} parent=35 // pred_check
        %p2809 = pneg %p100
      $region38: #{tpu_custom_call.1} parent=35 // pred_check_branch
        %2811 = sbr.rel (%p2809) target = $region40
      $region39: #{tpu_custom_call.1} parent=35 // pred_region
        %s2812 = smul.u32 3, %s20
        %p2813 = scmp.lt.s32.totalorder %s19, 1
        %s2814 = scalar_select %p2813, %s19, 1
        %p2815 = scmp.lt.s32.totalorder %s2812, 2
        %s2816 = scalar_select %p2815, %s2812, 2
        %s2817 = smul.addr %s2814, 48
        %s2818 = sadd.s32 %s2816, %s2817
        %s2819 = smul.addr %s2818, 8
        %s2820 = scalar_lea.vmem %s2, %s2819
      $region40: #{tpu_custom_call.1} parent=35 // pred_fallthru
        _
    $region36: #{tpu_custom_call.1} parent=5 // pred_fallthru
      _
  $region6: #{tpu_custom_call.1} parent=0 // loop_footer
    %s12 = sadd.s32 1, %s8
  $region7: #{tpu_custom_call.1} parent=0 // loop_footer_branch
    %7 = sbr.rel target = $region3
  $region8: #{tpu_custom_call.1} parent=0 // loop_exit
    _

</llo_original>
